<compile_context>
chip_gen: v7x
topology: tpu7x:2x2x1
jax: 0.10.0
libtpu: 0.0.40
codegen_flags: <defaults>
</compile_context>

<pallas_src>
import jax
import jax.numpy as jnp
from jax.experimental import pallas as pl
from jax.experimental.pallas import tpu as pltpu


def convlr_kernel(x_ref, wt_ref, b_ref, o_ref):
    """x_ref/o_ref: (W, tile_M, C) f32; wt_ref: (C, C) bf16; b_ref: (1, C) f32."""
    w_len, tile_m, c = x_ref.shape
    wt = wt_ref[...]                                    # loaded once, stays pinned in VMEM

    # Independent sub-chains along M hide the MXU result-FIFO latency of an
    # otherwise fully serial matmul chain (helps most on v5e/v6e MRF; harmless
    # on v7x's MRB).  Small-C matmuls are latency-bound -> allow more chains.
    max_sub = 4 if c <= 512 else 2
    n_sub = 1
    for cand in (4, 2):
        if cand <= max_sub and tile_m % (8 * cand) == 0:
            n_sub = cand
            break
    sub = tile_m // n_sub

    # Hoist the bias broadcast: JAX does not CSE broadcast_in_dim and the W
    # loops below are fully unrolled.
    b_full = jnp.broadcast_to(b_ref[...].astype(jnp.float32), (sub, c))

    def conv_relu(col_f32):
        # bf16 operands + f32 accumulation: native MXU path on v6e/v7x
        # (elementwise math stays f32 for v5e's VPU).
        y = jnp.dot(col_f32.astype(jnp.bfloat16), wt,
                    preferred_element_type=jnp.float32) + b_full
        return jnp.maximum(y, 0.0)

    def load_x(i, s):
        return x_ref[i, pl.ds(s * sub, sub), :]

    def load_o(i, s):
        return o_ref[i, pl.ds(s * sub, sub), :]

    def store(i, s, val):
        o_ref[i, pl.ds(s * sub, sub), :] = val

    # ---- L->R pass: stack[i] = relu(conv(stack[i-1])) + x[i]; column 0 copied.
    # The carry stays live in VMEM/vregs; o_ref stores are off the critical path.
    carry = [load_x(0, s) for s in range(n_sub)]
    for s in range(n_sub):
        store(0, s, carry[s])
    for i in range(1, w_len):                  # static unroll (W is static & small)
        carry = [conv_relu(carry[s]) + load_x(i, s) for s in range(n_sub)]
        for s in range(n_sub):
            store(i, s, carry[s])

    # ---- R->L pass: stack[p] = relu(conv(stack[p+1])) + stack[p]; last column
    # unchanged.  `carry` currently holds the (updated) column w-1.
    for pos in range(w_len - 2, -1, -1):       # static unroll
        carry = [conv_relu(carry[s]) + load_o(pos, s) for s in range(n_sub)]
        for s in range(n_sub):
            store(pos, s, carry[s])


def _vmem_budget():
    """Scoped-VMEM limit and a conservative data budget, per chip generation."""
    try:
        cap = int(pltpu.get_tpu_info().vmem_capacity_bytes)
    except Exception:
        cap = 64 * 2**20                       # conservative fallback (v7x-sized)
    vmem_limit = min(100 * 2**20, (cap * 3) // 4)
    data_budget = (vmem_limit * 3) // 4        # leave headroom for carries / spill
    return vmem_limit, data_budget


def _auto_tile_m(m, w, c, data_budget):
    """Largest sublane-multiple M tile whose double-buffered in/out tiles plus
    the resident weight fit the data budget."""
    fixed = 2 * (c * c * 2 + c * 4)            # bf16 weight + f32 bias, x2 buffers
    per_row = 4 * w * c * 4                    # (in + out) x double-buffer, f32
    avail = data_budget - fixed
    tile = avail // per_row if avail > per_row * 8 else 8
    tile = int(max(8, min(tile, max(m, 8), 512)))
    return max(8, (tile // 8) * 8)


def conv_lr(fea_nchw, conv_w, conv_b, *, tile_m=None):
    """fea_nchw: (N, C, H, W); conv_w: (C, C, KH, KW); conv_b: (C,)."""
    n, c, h, w = fea_nchw.shape
    kh, kw = conv_w.shape[2], conv_w.shape[3]
    # The center-tap reduction is exact only for width-1 columns with 'same'
    # padding and a kernel that does not mix rows (kh == 1).
    assert kh == 1 and kw % 2 == 1, "convLR kernel assumes kernel_size=(1, odd)"

    c_pad = pl.cdiv(c, 128) * 128              # lane-align channels
    wc = jnp.asarray(conv_w)[:, :, 0, (kw - 1) // 2]     # (C_out, C_in)
    wt = wc.T.astype(jnp.bfloat16)                        # (C_in, C_out), MXU RHS
    b = jnp.asarray(conv_b).reshape(1, c).astype(jnp.float32)
    if c_pad != c:
        # Zero-padded channels stay exactly zero through the whole recurrence
        # (zero weight rows/cols, zero bias, zero residual) and are sliced off.
        wt = jnp.pad(wt, ((0, c_pad - c), (0, c_pad - c)))
        b = jnp.pad(b, ((0, 0), (0, c_pad - c)))

    # NCHW -> (W, N*H, C): channels on the lane axis, rows on sublanes.
    # TODO(synk): keep producer/consumer in (W, N*H, C) layout in a real
    # pipeline to avoid these two full-tensor HBM transposes.
    x = jnp.transpose(fea_nchw, (3, 0, 2, 1)).reshape(w, n * h, c)
    x = x.astype(jnp.float32)
    if c_pad != c:
        x = jnp.pad(x, ((0, 0), (0, 0), (0, c_pad - c)))

    m = n * h
    vmem_limit, data_budget = _vmem_budget()
    auto_tm = _auto_tile_m(m, w, c_pad, data_budget)
    tile_m = auto_tm if tile_m is None else min(int(tile_m), auto_tm)
    tile_m = max(8, (min(tile_m, max(m, 8)) // 8) * 8)   # sublane multiple

    m_pad = pl.cdiv(m, tile_m) * tile_m
    if m_pad != m:                                       # rows are independent;
        x = jnp.pad(x, ((0, 0), (0, m_pad - m), (0, 0)))   # pad rows sliced off below
    grid = (m_pad // tile_m,)

    # Advisory cost hint: two passes of (w-1) dependent channel matmuls.
    cost = pl.CostEstimate(
        flops=4 * (w - 1) * m_pad * c_pad * c_pad,
        transcendentals=0,
        bytes_accessed=2 * w * m_pad * c_pad * 4 + c_pad * c_pad * 2 + c_pad * 4,
    )

    out = pl.pallas_call(
        convlr_kernel,
        out_shape=jax.ShapeDtypeStruct((w, m_pad, c_pad), jnp.float32),
        grid=grid,
        in_specs=[
            pl.BlockSpec((w, tile_m, c_pad), lambda i: (0, i, 0)),   # x tile (pipelined)
            pl.BlockSpec((c_pad, c_pad), lambda i: (0, 0)),          # weight (VMEM-resident)
            pl.BlockSpec((1, c_pad), lambda i: (0, 0)),              # bias (VMEM-resident)
        ],
        out_specs=pl.BlockSpec((w, tile_m, c_pad), lambda i: (0, i, 0)),
        compiler_params=pltpu.CompilerParams(
            dimension_semantics=("parallel",),   # shard M tiles across TensorCores
            vmem_limit_bytes=vmem_limit,
        ),
        cost_estimate=cost,
    )(x, wt, b)

    out = out[:, :m, :c]
    # (w, n*h, c) -> (w, n, h, c) -> (n, c, h, w)
    return out.reshape(w, n, h, c).transpose(1, 3, 2, 0)


def ref_convlr(fea, conv_w, conv_b):
    """Pure-JAX reference mirroring the PyTorch forward, with the same bf16
    matmul inputs / f32 accumulation precision as the kernel."""
    n, c, h, w = fea.shape
    kw = conv_w.shape[3]
    wc = conv_w[:, :, 0, (kw - 1) // 2].astype(jnp.bfloat16)   # (C_out, C_in)
    b = conv_b.astype(jnp.float32)

    def conv_col(col):  # col: (n, c, h) f32
        y = jnp.einsum('oc,nch->noh', wc, col.astype(jnp.bfloat16),
                       preferred_element_type=jnp.float32) + b[None, :, None]
        return jnp.maximum(y, 0.0)

    cols = [fea[:, :, :, i].astype(jnp.float32) for i in range(w)]
    stack = [cols[0]]
    for i in range(1, w):
        stack.append(conv_col(stack[i - 1]) + cols[i])
    for pos in range(w - 2, -1, -1):
        stack[pos] = conv_col(stack[pos + 1]) + stack[pos]
    return jnp.stack(stack, axis=3)


if __name__ == "__main__":
    key = jax.random.PRNGKey(0)
    k_x, k_w, k_b = jax.random.split(key, 3)

    # Small shapes consistent with the module (square channel conv, kernel (1,9)).
    N, C, H, W = 2, 128, 16, 8
    KH, KW = 1, 9

    fea = jax.random.normal(k_x, (N, C, H, W), dtype=jnp.float32)
    bound = float(1.0 / (C * KH * KW) ** 0.5)       # Conv2d default init scale
    conv_w = jax.random.uniform(k_w, (C, C, KH, KW), jnp.float32, -bound, bound)
    conv_b = jax.random.uniform(k_b, (C,), jnp.float32, -bound, bound)

    # tile_m=16 -> grid=(2,) at this toy size, exercising the tiled/pipelined path.
    out = jax.block_until_ready(conv_lr(fea, conv_w, conv_b, tile_m=16))
    ref = ref_convlr(fea, conv_w, conv_b)

    assert out.shape == (N, C, H, W)
    assert jnp.allclose(out, ref, atol=2e-2, rtol=2e-2), "mismatch vs reference"
    print("KERNEL_OK")
</pallas_src>

<mosaic_0001>
module attributes {stable_mosaic.version = 11 : i64} {
  func.func @convlr_kernel(%arg0: i32, %arg1: memref<8x16x128xf32, #tpu.memory_space<vmem>>, %arg2: memref<128x128xbf16, #tpu.memory_space<vmem>>, %arg3: memref<1x128xf32, #tpu.memory_space<vmem>>, %arg4: memref<8x16x128xf32, #tpu.memory_space<vmem>>) attributes {dimension_semantics = [#tpu.dimension_semantics<parallel>], iteration_bounds = array<i64: 2>, scalar_prefetch = 0 : i64, scratch_operands = 0 : i64, tpu.core_type = #tpu.core_type<tc>, window_params = [{transform_indices = @transform_0, window_bounds = array<i64: 8, 16, 128>}, {pipeline_mode = #tpu.pipeline_mode<synchronous>, transform_indices = @transform_1, window_bounds = array<i64: 128, 128>}, {pipeline_mode = #tpu.pipeline_mode<synchronous>, transform_indices = @transform_2, window_bounds = array<i64: 1, 128>}, {transform_indices = @transform_3, window_bounds = array<i64: 8, 16, 128>}]} {
    %c0 = arith.constant 0 : index
    %c0_0 = arith.constant 0 : index
    %0 = vector.load %arg2[%c0, %c0_0] : memref<128x128xbf16, #tpu.memory_space<vmem>>, vector<128x128xbf16>
    %c0_1 = arith.constant 0 : index
    %c0_2 = arith.constant 0 : index
    %1 = vector.load %arg3[%c0_1, %c0_2] : memref<1x128xf32, #tpu.memory_space<vmem>>, vector<1x128xf32>
    %2 = vector.shape_cast %1 : vector<1x128xf32> to vector<1x128xf32>
    %3 = vector.broadcast %2 : vector<1x128xf32> to vector<8x128xf32>
    %c0_3 = arith.constant 0 : index
    %c0_4 = arith.constant 0 : index
    %c0_5 = arith.constant 0 : index
    %4 = vector.load %arg1[%c0_3, %c0_4, %c0_5] : memref<8x16x128xf32, #tpu.memory_space<vmem>>, vector<1x8x128xf32>
    %5 = vector.shape_cast %4 : vector<1x8x128xf32> to vector<8x128xf32>
    %c0_6 = arith.constant 0 : index
    %c8 = arith.constant 8 : index
    %c0_7 = arith.constant 0 : index
    %6 = vector.load %arg1[%c0_6, %c8, %c0_7] : memref<8x16x128xf32, #tpu.memory_space<vmem>>, vector<1x8x128xf32>
    %7 = vector.shape_cast %6 : vector<1x8x128xf32> to vector<8x128xf32>
    %c0_8 = arith.constant 0 : index
    %c0_9 = arith.constant 0 : index
    %c0_10 = arith.constant 0 : index
    %8 = vector.load %arg4[%c0_8, %c0_9, %c0_10] : memref<8x16x128xf32, #tpu.memory_space<vmem>>, vector<1x8x128xf32>
    %9 = vector.shape_cast %8 : vector<1x8x128xf32> to vector<8x128xf32>
    %10 = vector.shape_cast %5 : vector<8x128xf32> to vector<1x8x128xf32>
    tpu.vector_store %arg4[%c0_8, %c0_9, %c0_10], %10 {strides = array<i32>} : memref<8x16x128xf32, #tpu.memory_space<vmem>>, vector<1x8x128xf32>,
    %c0_11 = arith.constant 0 : index
    %c8_12 = arith.constant 8 : index
    %c0_13 = arith.constant 0 : index
    %11 = vector.load %arg4[%c0_11, %c8_12, %c0_13] : memref<8x16x128xf32, #tpu.memory_space<vmem>>, vector<1x8x128xf32>
    %12 = vector.shape_cast %11 : vector<1x8x128xf32> to vector<8x128xf32>
    %13 = vector.shape_cast %7 : vector<8x128xf32> to vector<1x8x128xf32>
    tpu.vector_store %arg4[%c0_11, %c8_12, %c0_13], %13 {strides = array<i32>} : memref<8x16x128xf32, #tpu.memory_space<vmem>>, vector<1x8x128xf32>,
    %14 = arith.truncf %5 : vector<8x128xf32> to vector<8x128xbf16>
    %cst = arith.constant dense<0.000000e+00> : vector<8x128xf32>
    %15 = tpu.matmul %14, %0, %cst {dimension_numbers = #tpu.dot_dimension_numbers<[1], [0], [0], [1], [0, 0, 1, 1], [], []>} : vector<8x128xbf16>, vector<128x128xbf16>, vector<8x128xf32> -> vector<8x128xf32>
    %16 = arith.addf %15, %3 : vector<8x128xf32>
    %cst_14 = arith.constant 0.000000e+00 : f32
    %17 = vector.broadcast %cst_14 : f32 to vector<8x128xf32>
    %18 = arith.maximumf %16, %17 : vector<8x128xf32>
    %c1 = arith.constant 1 : index
    %c0_15 = arith.constant 0 : index
    %c0_16 = arith.constant 0 : index
    %19 = vector.load %arg1[%c1, %c0_15, %c0_16] : memref<8x16x128xf32, #tpu.memory_space<vmem>>, vector<1x8x128xf32>
    %20 = vector.shape_cast %19 : vector<1x8x128xf32> to vector<8x128xf32>
    %21 = arith.addf %18, %20 : vector<8x128xf32>
    %22 = arith.truncf %7 : vector<8x128xf32> to vector<8x128xbf16>
    %cst_17 = arith.constant dense<0.000000e+00> : vector<8x128xf32>
    %23 = tpu.matmul %22, %0, %cst_17 {dimension_numbers = #tpu.dot_dimension_numbers<[1], [0], [0], [1], [0, 0, 1, 1], [], []>} : vector<8x128xbf16>, vector<128x128xbf16>, vector<8x128xf32> -> vector<8x128xf32>
    %24 = arith.addf %23, %3 : vector<8x128xf32>
    %cst_18 = arith.constant 0.000000e+00 : f32
    %25 = vector.broadcast %cst_18 : f32 to vector<8x128xf32>
    %26 = arith.maximumf %24, %25 : vector<8x128xf32>
    %c1_19 = arith.constant 1 : index
    %c8_20 = arith.constant 8 : index
    %c0_21 = arith.constant 0 : index
    %27 = vector.load %arg1[%c1_19, %c8_20, %c0_21] : memref<8x16x128xf32, #tpu.memory_space<vmem>>, vector<1x8x128xf32>
    %28 = vector.shape_cast %27 : vector<1x8x128xf32> to vector<8x128xf32>
    %29 = arith.addf %26, %28 : vector<8x128xf32>
    %c1_22 = arith.constant 1 : index
    %c0_23 = arith.constant 0 : index
    %c0_24 = arith.constant 0 : index
    %30 = vector.load %arg4[%c1_22, %c0_23, %c0_24] : memref<8x16x128xf32, #tpu.memory_space<vmem>>, vector<1x8x128xf32>
    %31 = vector.shape_cast %30 : vector<1x8x128xf32> to vector<8x128xf32>
    %32 = vector.shape_cast %21 : vector<8x128xf32> to vector<1x8x128xf32>
    tpu.vector_store %arg4[%c1_22, %c0_23, %c0_24], %32 {strides = array<i32>} : memref<8x16x128xf32, #tpu.memory_space<vmem>>, vector<1x8x128xf32>,
    %c1_25 = arith.constant 1 : index
    %c8_26 = arith.constant 8 : index
    %c0_27 = arith.constant 0 : index
    %33 = vector.load %arg4[%c1_25, %c8_26, %c0_27] : memref<8x16x128xf32, #tpu.memory_space<vmem>>, vector<1x8x128xf32>
    %34 = vector.shape_cast %33 : vector<1x8x128xf32> to vector<8x128xf32>
    %35 = vector.shape_cast %29 : vector<8x128xf32> to vector<1x8x128xf32>
    tpu.vector_store %arg4[%c1_25, %c8_26, %c0_27], %35 {strides = array<i32>} : memref<8x16x128xf32, #tpu.memory_space<vmem>>, vector<1x8x128xf32>,
    %36 = arith.truncf %21 : vector<8x128xf32> to vector<8x128xbf16>
    %cst_28 = arith.constant dense<0.000000e+00> : vector<8x128xf32>
    %37 = tpu.matmul %36, %0, %cst_28 {dimension_numbers = #tpu.dot_dimension_numbers<[1], [0], [0], [1], [0, 0, 1, 1], [], []>} : vector<8x128xbf16>, vector<128x128xbf16>, vector<8x128xf32> -> vector<8x128xf32>
    %38 = arith.addf %37, %3 : vector<8x128xf32>
    %cst_29 = arith.constant 0.000000e+00 : f32
    %39 = vector.broadcast %cst_29 : f32 to vector<8x128xf32>
    %40 = arith.maximumf %38, %39 : vector<8x128xf32>
    %c2 = arith.constant 2 : index
    %c0_30 = arith.constant 0 : index
    %c0_31 = arith.constant 0 : index
    %41 = vector.load %arg1[%c2, %c0_30, %c0_31] : memref<8x16x128xf32, #tpu.memory_space<vmem>>, vector<1x8x128xf32>
    %42 = vector.shape_cast %41 : vector<1x8x128xf32> to vector<8x128xf32>
    %43 = arith.addf %40, %42 : vector<8x128xf32>
    %44 = arith.truncf %29 : vector<8x128xf32> to vector<8x128xbf16>
    %cst_32 = arith.constant dense<0.000000e+00> : vector<8x128xf32>
    %45 = tpu.matmul %44, %0, %cst_32 {dimension_numbers = #tpu.dot_dimension_numbers<[1], [0], [0], [1], [0, 0, 1, 1], [], []>} : vector<8x128xbf16>, vector<128x128xbf16>, vector<8x128xf32> -> vector<8x128xf32>
    %46 = arith.addf %45, %3 : vector<8x128xf32>
    %cst_33 = arith.constant 0.000000e+00 : f32
    %47 = vector.broadcast %cst_33 : f32 to vector<8x128xf32>
    %48 = arith.maximumf %46, %47 : vector<8x128xf32>
    %c2_34 = arith.constant 2 : index
    %c8_35 = arith.constant 8 : index
    %c0_36 = arith.constant 0 : index
    %49 = vector.load %arg1[%c2_34, %c8_35, %c0_36] : memref<8x16x128xf32, #tpu.memory_space<vmem>>, vector<1x8x128xf32>
    %50 = vector.shape_cast %49 : vector<1x8x128xf32> to vector<8x128xf32>
    %51 = arith.addf %48, %50 : vector<8x128xf32>
    %c2_37 = arith.constant 2 : index
    %c0_38 = arith.constant 0 : index
    %c0_39 = arith.constant 0 : index
    %52 = vector.load %arg4[%c2_37, %c0_38, %c0_39] : memref<8x16x128xf32, #tpu.memory_space<vmem>>, vector<1x8x128xf32>
    %53 = vector.shape_cast %52 : vector<1x8x128xf32> to vector<8x128xf32>
    %54 = vector.shape_cast %43 : vector<8x128xf32> to vector<1x8x128xf32>
    tpu.vector_store %arg4[%c2_37, %c0_38, %c0_39], %54 {strides = array<i32>} : memref<8x16x128xf32, #tpu.memory_space<vmem>>, vector<1x8x128xf32>,
    %c2_40 = arith.constant 2 : index
    %c8_41 = arith.constant 8 : index
    %c0_42 = arith.constant 0 : index
    %55 = vector.load %arg4[%c2_40, %c8_41, %c0_42] : memref<8x16x128xf32, #tpu.memory_space<vmem>>, vector<1x8x128xf32>
    %56 = vector.shape_cast %55 : vector<1x8x128xf32> to vector<8x128xf32>
    %57 = vector.shape_cast %51 : vector<8x128xf32> to vector<1x8x128xf32>
    tpu.vector_store %arg4[%c2_40, %c8_41, %c0_42], %57 {strides = array<i32>} : memref<8x16x128xf32, #tpu.memory_space<vmem>>, vector<1x8x128xf32>,
    %58 = arith.truncf %43 : vector<8x128xf32> to vector<8x128xbf16>
    %cst_43 = arith.constant dense<0.000000e+00> : vector<8x128xf32>
    %59 = tpu.matmul %58, %0, %cst_43 {dimension_numbers = #tpu.dot_dimension_numbers<[1], [0], [0], [1], [0, 0, 1, 1], [], []>} : vector<8x128xbf16>, vector<128x128xbf16>, vector<8x128xf32> -> vector<8x128xf32>
    %60 = arith.addf %59, %3 : vector<8x128xf32>
    %cst_44 = arith.constant 0.000000e+00 : f32
    %61 = vector.broadcast %cst_44 : f32 to vector<8x128xf32>
    %62 = arith.maximumf %60, %61 : vector<8x128xf32>
    %c3 = arith.constant 3 : index
    %c0_45 = arith.constant 0 : index
    %c0_46 = arith.constant 0 : index
    %63 = vector.load %arg1[%c3, %c0_45, %c0_46] : memref<8x16x128xf32, #tpu.memory_space<vmem>>, vector<1x8x128xf32>
    %64 = vector.shape_cast %63 : vector<1x8x128xf32> to vector<8x128xf32>
    %65 = arith.addf %62, %64 : vector<8x128xf32>
    %66 = arith.truncf %51 : vector<8x128xf32> to vector<8x128xbf16>
    %cst_47 = arith.constant dense<0.000000e+00> : vector<8x128xf32>
    %67 = tpu.matmul %66, %0, %cst_47 {dimension_numbers = #tpu.dot_dimension_numbers<[1], [0], [0], [1], [0, 0, 1, 1], [], []>} : vector<8x128xbf16>, vector<128x128xbf16>, vector<8x128xf32> -> vector<8x128xf32>
    %68 = arith.addf %67, %3 : vector<8x128xf32>
    %cst_48 = arith.constant 0.000000e+00 : f32
    %69 = vector.broadcast %cst_48 : f32 to vector<8x128xf32>
    %70 = arith.maximumf %68, %69 : vector<8x128xf32>
    %c3_49 = arith.constant 3 : index
    %c8_50 = arith.constant 8 : index
    %c0_51 = arith.constant 0 : index
    %71 = vector.load %arg1[%c3_49, %c8_50, %c0_51] : memref<8x16x128xf32, #tpu.memory_space<vmem>>, vector<1x8x128xf32>
    %72 = vector.shape_cast %71 : vector<1x8x128xf32> to vector<8x128xf32>
    %73 = arith.addf %70, %72 : vector<8x128xf32>
    %c3_52 = arith.constant 3 : index
    %c0_53 = arith.constant 0 : index
    %c0_54 = arith.constant 0 : index
    %74 = vector.load %arg4[%c3_52, %c0_53, %c0_54] : memref<8x16x128xf32, #tpu.memory_space<vmem>>, vector<1x8x128xf32>
    %75 = vector.shape_cast %74 : vector<1x8x128xf32> to vector<8x128xf32>
    %76 = vector.shape_cast %65 : vector<8x128xf32> to vector<1x8x128xf32>
    tpu.vector_store %arg4[%c3_52, %c0_53, %c0_54], %76 {strides = array<i32>} : memref<8x16x128xf32, #tpu.memory_space<vmem>>, vector<1x8x128xf32>,
    %c3_55 = arith.constant 3 : index
    %c8_56 = arith.constant 8 : index
    %c0_57 = arith.constant 0 : index
    %77 = vector.load %arg4[%c3_55, %c8_56, %c0_57] : memref<8x16x128xf32, #tpu.memory_space<vmem>>, vector<1x8x128xf32>
    %78 = vector.shape_cast %77 : vector<1x8x128xf32> to vector<8x128xf32>
    %79 = vector.shape_cast %73 : vector<8x128xf32> to vector<1x8x128xf32>
    tpu.vector_store %arg4[%c3_55, %c8_56, %c0_57], %79 {strides = array<i32>} : memref<8x16x128xf32, #tpu.memory_space<vmem>>, vector<1x8x128xf32>,
    %80 = arith.truncf %65 : vector<8x128xf32> to vector<8x128xbf16>
    %cst_58 = arith.constant dense<0.000000e+00> : vector<8x128xf32>
    %81 = tpu.matmul %80, %0, %cst_58 {dimension_numbers = #tpu.dot_dimension_numbers<[1], [0], [0], [1], [0, 0, 1, 1], [], []>} : vector<8x128xbf16>, vector<128x128xbf16>, vector<8x128xf32> -> vector<8x128xf32>
    %82 = arith.addf %81, %3 : vector<8x128xf32>
    %cst_59 = arith.constant 0.000000e+00 : f32
    %83 = vector.broadcast %cst_59 : f32 to vector<8x128xf32>
    %84 = arith.maximumf %82, %83 : vector<8x128xf32>
    %c4 = arith.constant 4 : index
    %c0_60 = arith.constant 0 : index
    %c0_61 = arith.constant 0 : index
    %85 = vector.load %arg1[%c4, %c0_60, %c0_61] : memref<8x16x128xf32, #tpu.memory_space<vmem>>, vector<1x8x128xf32>
    %86 = vector.shape_cast %85 : vector<1x8x128xf32> to vector<8x128xf32>
    %87 = arith.addf %84, %86 : vector<8x128xf32>
    %88 = arith.truncf %73 : vector<8x128xf32> to vector<8x128xbf16>
    %cst_62 = arith.constant dense<0.000000e+00> : vector<8x128xf32>
    %89 = tpu.matmul %88, %0, %cst_62 {dimension_numbers = #tpu.dot_dimension_numbers<[1], [0], [0], [1], [0, 0, 1, 1], [], []>} : vector<8x128xbf16>, vector<128x128xbf16>, vector<8x128xf32> -> vector<8x128xf32>
    %90 = arith.addf %89, %3 : vector<8x128xf32>
    %cst_63 = arith.constant 0.000000e+00 : f32
    %91 = vector.broadcast %cst_63 : f32 to vector<8x128xf32>
    %92 = arith.maximumf %90, %91 : vector<8x128xf32>
    %c4_64 = arith.constant 4 : index
    %c8_65 = arith.constant 8 : index
    %c0_66 = arith.constant 0 : index
    %93 = vector.load %arg1[%c4_64, %c8_65, %c0_66] : memref<8x16x128xf32, #tpu.memory_space<vmem>>, vector<1x8x128xf32>
    %94 = vector.shape_cast %93 : vector<1x8x128xf32> to vector<8x128xf32>
    %95 = arith.addf %92, %94 : vector<8x128xf32>
    %c4_67 = arith.constant 4 : index
    %c0_68 = arith.constant 0 : index
    %c0_69 = arith.constant 0 : index
    %96 = vector.load %arg4[%c4_67, %c0_68, %c0_69] : memref<8x16x128xf32, #tpu.memory_space<vmem>>, vector<1x8x128xf32>
    %97 = vector.shape_cast %96 : vector<1x8x128xf32> to vector<8x128xf32>
    %98 = vector.shape_cast %87 : vector<8x128xf32> to vector<1x8x128xf32>
    tpu.vector_store %arg4[%c4_67, %c0_68, %c0_69], %98 {strides = array<i32>} : memref<8x16x128xf32, #tpu.memory_space<vmem>>, vector<1x8x128xf32>,
    %c4_70 = arith.constant 4 : index
    %c8_71 = arith.constant 8 : index
    %c0_72 = arith.constant 0 : index
    %99 = vector.load %arg4[%c4_70, %c8_71, %c0_72] : memref<8x16x128xf32, #tpu.memory_space<vmem>>, vector<1x8x128xf32>
    %100 = vector.shape_cast %99 : vector<1x8x128xf32> to vector<8x128xf32>
    %101 = vector.shape_cast %95 : vector<8x128xf32> to vector<1x8x128xf32>
    tpu.vector_store %arg4[%c4_70, %c8_71, %c0_72], %101 {strides = array<i32>} : memref<8x16x128xf32, #tpu.memory_space<vmem>>, vector<1x8x128xf32>,
    %102 = arith.truncf %87 : vector<8x128xf32> to vector<8x128xbf16>
    %cst_73 = arith.constant dense<0.000000e+00> : vector<8x128xf32>
    %103 = tpu.matmul %102, %0, %cst_73 {dimension_numbers = #tpu.dot_dimension_numbers<[1], [0], [0], [1], [0, 0, 1, 1], [], []>} : vector<8x128xbf16>, vector<128x128xbf16>, vector<8x128xf32> -> vector<8x128xf32>
    %104 = arith.addf %103, %3 : vector<8x128xf32>
    %cst_74 = arith.constant 0.000000e+00 : f32
    %105 = vector.broadcast %cst_74 : f32 to vector<8x128xf32>
    %106 = arith.maximumf %104, %105 : vector<8x128xf32>
    %c5 = arith.constant 5 : index
    %c0_75 = arith.constant 0 : index
    %c0_76 = arith.constant 0 : index
    %107 = vector.load %arg1[%c5, %c0_75, %c0_76] : memref<8x16x128xf32, #tpu.memory_space<vmem>>, vector<1x8x128xf32>
    %108 = vector.shape_cast %107 : vector<1x8x128xf32> to vector<8x128xf32>
    %109 = arith.addf %106, %108 : vector<8x128xf32>
    %110 = arith.truncf %95 : vector<8x128xf32> to vector<8x128xbf16>
    %cst_77 = arith.constant dense<0.000000e+00> : vector<8x128xf32>
    %111 = tpu.matmul %110, %0, %cst_77 {dimension_numbers = #tpu.dot_dimension_numbers<[1], [0], [0], [1], [0, 0, 1, 1], [], []>} : vector<8x128xbf16>, vector<128x128xbf16>, vector<8x128xf32> -> vector<8x128xf32>
    %112 = arith.addf %111, %3 : vector<8x128xf32>
    %cst_78 = arith.constant 0.000000e+00 : f32
    %113 = vector.broadcast %cst_78 : f32 to vector<8x128xf32>
    %114 = arith.maximumf %112, %113 : vector<8x128xf32>
    %c5_79 = arith.constant 5 : index
    %c8_80 = arith.constant 8 : index
    %c0_81 = arith.constant 0 : index
    %115 = vector.load %arg1[%c5_79, %c8_80, %c0_81] : memref<8x16x128xf32, #tpu.memory_space<vmem>>, vector<1x8x128xf32>
    %116 = vector.shape_cast %115 : vector<1x8x128xf32> to vector<8x128xf32>
    %117 = arith.addf %114, %116 : vector<8x128xf32>
    %c5_82 = arith.constant 5 : index
    %c0_83 = arith.constant 0 : index
    %c0_84 = arith.constant 0 : index
    %118 = vector.load %arg4[%c5_82, %c0_83, %c0_84] : memref<8x16x128xf32, #tpu.memory_space<vmem>>, vector<1x8x128xf32>
    %119 = vector.shape_cast %118 : vector<1x8x128xf32> to vector<8x128xf32>
    %120 = vector.shape_cast %109 : vector<8x128xf32> to vector<1x8x128xf32>
    tpu.vector_store %arg4[%c5_82, %c0_83, %c0_84], %120 {strides = array<i32>} : memref<8x16x128xf32, #tpu.memory_space<vmem>>, vector<1x8x128xf32>,
    %c5_85 = arith.constant 5 : index
    %c8_86 = arith.constant 8 : index
    %c0_87 = arith.constant 0 : index
    %121 = vector.load %arg4[%c5_85, %c8_86, %c0_87] : memref<8x16x128xf32, #tpu.memory_space<vmem>>, vector<1x8x128xf32>
    %122 = vector.shape_cast %121 : vector<1x8x128xf32> to vector<8x128xf32>
    %123 = vector.shape_cast %117 : vector<8x128xf32> to vector<1x8x128xf32>
    tpu.vector_store %arg4[%c5_85, %c8_86, %c0_87], %123 {strides = array<i32>} : memref<8x16x128xf32, #tpu.memory_space<vmem>>, vector<1x8x128xf32>,
    %124 = arith.truncf %109 : vector<8x128xf32> to vector<8x128xbf16>
    %cst_88 = arith.constant dense<0.000000e+00> : vector<8x128xf32>
    %125 = tpu.matmul %124, %0, %cst_88 {dimension_numbers = #tpu.dot_dimension_numbers<[1], [0], [0], [1], [0, 0, 1, 1], [], []>} : vector<8x128xbf16>, vector<128x128xbf16>, vector<8x128xf32> -> vector<8x128xf32>
    %126 = arith.addf %125, %3 : vector<8x128xf32>
    %cst_89 = arith.constant 0.000000e+00 : f32
    %127 = vector.broadcast %cst_89 : f32 to vector<8x128xf32>
    %128 = arith.maximumf %126, %127 : vector<8x128xf32>
    %c6 = arith.constant 6 : index
    %c0_90 = arith.constant 0 : index
    %c0_91 = arith.constant 0 : index
    %129 = vector.load %arg1[%c6, %c0_90, %c0_91] : memref<8x16x128xf32, #tpu.memory_space<vmem>>, vector<1x8x128xf32>
    %130 = vector.shape_cast %129 : vector<1x8x128xf32> to vector<8x128xf32>
    %131 = arith.addf %128, %130 : vector<8x128xf32>
    %132 = arith.truncf %117 : vector<8x128xf32> to vector<8x128xbf16>
    %cst_92 = arith.constant dense<0.000000e+00> : vector<8x128xf32>
    %133 = tpu.matmul %132, %0, %cst_92 {dimension_numbers = #tpu.dot_dimension_numbers<[1], [0], [0], [1], [0, 0, 1, 1], [], []>} : vector<8x128xbf16>, vector<128x128xbf16>, vector<8x128xf32> -> vector<8x128xf32>
    %134 = arith.addf %133, %3 : vector<8x128xf32>
    %cst_93 = arith.constant 0.000000e+00 : f32
    %135 = vector.broadcast %cst_93 : f32 to vector<8x128xf32>
    %136 = arith.maximumf %134, %135 : vector<8x128xf32>
    %c6_94 = arith.constant 6 : index
    %c8_95 = arith.constant 8 : index
    %c0_96 = arith.constant 0 : index
    %137 = vector.load %arg1[%c6_94, %c8_95, %c0_96] : memref<8x16x128xf32, #tpu.memory_space<vmem>>, vector<1x8x128xf32>
    %138 = vector.shape_cast %137 : vector<1x8x128xf32> to vector<8x128xf32>
    %139 = arith.addf %136, %138 : vector<8x128xf32>
    %c6_97 = arith.constant 6 : index
    %c0_98 = arith.constant 0 : index
    %c0_99 = arith.constant 0 : index
    %140 = vector.load %arg4[%c6_97, %c0_98, %c0_99] : memref<8x16x128xf32, #tpu.memory_space<vmem>>, vector<1x8x128xf32>
    %141 = vector.shape_cast %140 : vector<1x8x128xf32> to vector<8x128xf32>
    %142 = vector.shape_cast %131 : vector<8x128xf32> to vector<1x8x128xf32>
    tpu.vector_store %arg4[%c6_97, %c0_98, %c0_99], %142 {strides = array<i32>} : memref<8x16x128xf32, #tpu.memory_space<vmem>>, vector<1x8x128xf32>,
    %c6_100 = arith.constant 6 : index
    %c8_101 = arith.constant 8 : index
    %c0_102 = arith.constant 0 : index
    %143 = vector.load %arg4[%c6_100, %c8_101, %c0_102] : memref<8x16x128xf32, #tpu.memory_space<vmem>>, vector<1x8x128xf32>
    %144 = vector.shape_cast %143 : vector<1x8x128xf32> to vector<8x128xf32>
    %145 = vector.shape_cast %139 : vector<8x128xf32> to vector<1x8x128xf32>
    tpu.vector_store %arg4[%c6_100, %c8_101, %c0_102], %145 {strides = array<i32>} : memref<8x16x128xf32, #tpu.memory_space<vmem>>, vector<1x8x128xf32>,
    %146 = arith.truncf %131 : vector<8x128xf32> to vector<8x128xbf16>
    %cst_103 = arith.constant dense<0.000000e+00> : vector<8x128xf32>
    %147 = tpu.matmul %146, %0, %cst_103 {dimension_numbers = #tpu.dot_dimension_numbers<[1], [0], [0], [1], [0, 0, 1, 1], [], []>} : vector<8x128xbf16>, vector<128x128xbf16>, vector<8x128xf32> -> vector<8x128xf32>
    %148 = arith.addf %147, %3 : vector<8x128xf32>
    %cst_104 = arith.constant 0.000000e+00 : f32
    %149 = vector.broadcast %cst_104 : f32 to vector<8x128xf32>
    %150 = arith.maximumf %148, %149 : vector<8x128xf32>
    %c7 = arith.constant 7 : index
    %c0_105 = arith.constant 0 : index
    %c0_106 = arith.constant 0 : index
    %151 = vector.load %arg1[%c7, %c0_105, %c0_106] : memref<8x16x128xf32, #tpu.memory_space<vmem>>, vector<1x8x128xf32>
    %152 = vector.shape_cast %151 : vector<1x8x128xf32> to vector<8x128xf32>
    %153 = arith.addf %150, %152 : vector<8x128xf32>
    %154 = arith.truncf %139 : vector<8x128xf32> to vector<8x128xbf16>
    %cst_107 = arith.constant dense<0.000000e+00> : vector<8x128xf32>
    %155 = tpu.matmul %154, %0, %cst_107 {dimension_numbers = #tpu.dot_dimension_numbers<[1], [0], [0], [1], [0, 0, 1, 1], [], []>} : vector<8x128xbf16>, vector<128x128xbf16>, vector<8x128xf32> -> vector<8x128xf32>
    %156 = arith.addf %155, %3 : vector<8x128xf32>
    %cst_108 = arith.constant 0.000000e+00 : f32
    %157 = vector.broadcast %cst_108 : f32 to vector<8x128xf32>
    %158 = arith.maximumf %156, %157 : vector<8x128xf32>
    %c7_109 = arith.constant 7 : index
    %c8_110 = arith.constant 8 : index
    %c0_111 = arith.constant 0 : index
    %159 = vector.load %arg1[%c7_109, %c8_110, %c0_111] : memref<8x16x128xf32, #tpu.memory_space<vmem>>, vector<1x8x128xf32>
    %160 = vector.shape_cast %159 : vector<1x8x128xf32> to vector<8x128xf32>
    %161 = arith.addf %158, %160 : vector<8x128xf32>
    %c7_112 = arith.constant 7 : index
    %c0_113 = arith.constant 0 : index
    %c0_114 = arith.constant 0 : index
    %162 = vector.load %arg4[%c7_112, %c0_113, %c0_114] : memref<8x16x128xf32, #tpu.memory_space<vmem>>, vector<1x8x128xf32>
    %163 = vector.shape_cast %162 : vector<1x8x128xf32> to vector<8x128xf32>
    %164 = vector.shape_cast %153 : vector<8x128xf32> to vector<1x8x128xf32>
    tpu.vector_store %arg4[%c7_112, %c0_113, %c0_114], %164 {strides = array<i32>} : memref<8x16x128xf32, #tpu.memory_space<vmem>>, vector<1x8x128xf32>,
    %c7_115 = arith.constant 7 : index
    %c8_116 = arith.constant 8 : index
    %c0_117 = arith.constant 0 : index
    %165 = vector.load %arg4[%c7_115, %c8_116, %c0_117] : memref<8x16x128xf32, #tpu.memory_space<vmem>>, vector<1x8x128xf32>
    %166 = vector.shape_cast %165 : vector<1x8x128xf32> to vector<8x128xf32>
    %167 = vector.shape_cast %161 : vector<8x128xf32> to vector<1x8x128xf32>
    tpu.vector_store %arg4[%c7_115, %c8_116, %c0_117], %167 {strides = array<i32>} : memref<8x16x128xf32, #tpu.memory_space<vmem>>, vector<1x8x128xf32>,
    %168 = arith.truncf %153 : vector<8x128xf32> to vector<8x128xbf16>
    %cst_118 = arith.constant dense<0.000000e+00> : vector<8x128xf32>
    %169 = tpu.matmul %168, %0, %cst_118 {dimension_numbers = #tpu.dot_dimension_numbers<[1], [0], [0], [1], [0, 0, 1, 1], [], []>} : vector<8x128xbf16>, vector<128x128xbf16>, vector<8x128xf32> -> vector<8x128xf32>
    %170 = arith.addf %169, %3 : vector<8x128xf32>
    %cst_119 = arith.constant 0.000000e+00 : f32
    %171 = vector.broadcast %cst_119 : f32 to vector<8x128xf32>
    %172 = arith.maximumf %170, %171 : vector<8x128xf32>
    %c6_120 = arith.constant 6 : index
    %c0_121 = arith.constant 0 : index
    %c0_122 = arith.constant 0 : index
    %173 = vector.load %arg4[%c6_120, %c0_121, %c0_122] : memref<8x16x128xf32, #tpu.memory_space<vmem>>, vector<1x8x128xf32>
    %174 = vector.shape_cast %173 : vector<1x8x128xf32> to vector<8x128xf32>
    %175 = arith.addf %172, %174 : vector<8x128xf32>
    %176 = arith.truncf %161 : vector<8x128xf32> to vector<8x128xbf16>
    %cst_123 = arith.constant dense<0.000000e+00> : vector<8x128xf32>
    %177 = tpu.matmul %176, %0, %cst_123 {dimension_numbers = #tpu.dot_dimension_numbers<[1], [0], [0], [1], [0, 0, 1, 1], [], []>} : vector<8x128xbf16>, vector<128x128xbf16>, vector<8x128xf32> -> vector<8x128xf32>
    %178 = arith.addf %177, %3 : vector<8x128xf32>
    %cst_124 = arith.constant 0.000000e+00 : f32
    %179 = vector.broadcast %cst_124 : f32 to vector<8x128xf32>
    %180 = arith.maximumf %178, %179 : vector<8x128xf32>
    %c6_125 = arith.constant 6 : index
    %c8_126 = arith.constant 8 : index
    %c0_127 = arith.constant 0 : index
    %181 = vector.load %arg4[%c6_125, %c8_126, %c0_127] : memref<8x16x128xf32, #tpu.memory_space<vmem>>, vector<1x8x128xf32>
    %182 = vector.shape_cast %181 : vector<1x8x128xf32> to vector<8x128xf32>
    %183 = arith.addf %180, %182 : vector<8x128xf32>
    %c6_128 = arith.constant 6 : index
    %c0_129 = arith.constant 0 : index
    %c0_130 = arith.constant 0 : index
    %184 = vector.load %arg4[%c6_128, %c0_129, %c0_130] : memref<8x16x128xf32, #tpu.memory_space<vmem>>, vector<1x8x128xf32>
    %185 = vector.shape_cast %184 : vector<1x8x128xf32> to vector<8x128xf32>
    %186 = vector.shape_cast %175 : vector<8x128xf32> to vector<1x8x128xf32>
    tpu.vector_store %arg4[%c6_128, %c0_129, %c0_130], %186 {strides = array<i32>} : memref<8x16x128xf32, #tpu.memory_space<vmem>>, vector<1x8x128xf32>,
    %c6_131 = arith.constant 6 : index
    %c8_132 = arith.constant 8 : index
    %c0_133 = arith.constant 0 : index
    %187 = vector.load %arg4[%c6_131, %c8_132, %c0_133] : memref<8x16x128xf32, #tpu.memory_space<vmem>>, vector<1x8x128xf32>
    %188 = vector.shape_cast %187 : vector<1x8x128xf32> to vector<8x128xf32>
    %189 = vector.shape_cast %183 : vector<8x128xf32> to vector<1x8x128xf32>
    tpu.vector_store %arg4[%c6_131, %c8_132, %c0_133], %189 {strides = array<i32>} : memref<8x16x128xf32, #tpu.memory_space<vmem>>, vector<1x8x128xf32>,
    %190 = arith.truncf %175 : vector<8x128xf32> to vector<8x128xbf16>
    %cst_134 = arith.constant dense<0.000000e+00> : vector<8x128xf32>
    %191 = tpu.matmul %190, %0, %cst_134 {dimension_numbers = #tpu.dot_dimension_numbers<[1], [0], [0], [1], [0, 0, 1, 1], [], []>} : vector<8x128xbf16>, vector<128x128xbf16>, vector<8x128xf32> -> vector<8x128xf32>
    %192 = arith.addf %191, %3 : vector<8x128xf32>
    %cst_135 = arith.constant 0.000000e+00 : f32
    %193 = vector.broadcast %cst_135 : f32 to vector<8x128xf32>
    %194 = arith.maximumf %192, %193 : vector<8x128xf32>
    %c5_136 = arith.constant 5 : index
    %c0_137 = arith.constant 0 : index
    %c0_138 = arith.constant 0 : index
    %195 = vector.load %arg4[%c5_136, %c0_137, %c0_138] : memref<8x16x128xf32, #tpu.memory_space<vmem>>, vector<1x8x128xf32>
    %196 = vector.shape_cast %195 : vector<1x8x128xf32> to vector<8x128xf32>
    %197 = arith.addf %194, %196 : vector<8x128xf32>
    %198 = arith.truncf %183 : vector<8x128xf32> to vector<8x128xbf16>
    %cst_139 = arith.constant dense<0.000000e+00> : vector<8x128xf32>
    %199 = tpu.matmul %198, %0, %cst_139 {dimension_numbers = #tpu.dot_dimension_numbers<[1], [0], [0], [1], [0, 0, 1, 1], [], []>} : vector<8x128xbf16>, vector<128x128xbf16>, vector<8x128xf32> -> vector<8x128xf32>
    %200 = arith.addf %199, %3 : vector<8x128xf32>
    %cst_140 = arith.constant 0.000000e+00 : f32
    %201 = vector.broadcast %cst_140 : f32 to vector<8x128xf32>
    %202 = arith.maximumf %200, %201 : vector<8x128xf32>
    %c5_141 = arith.constant 5 : index
    %c8_142 = arith.constant 8 : index
    %c0_143 = arith.constant 0 : index
    %203 = vector.load %arg4[%c5_141, %c8_142, %c0_143] : memref<8x16x128xf32, #tpu.memory_space<vmem>>, vector<1x8x128xf32>
    %204 = vector.shape_cast %203 : vector<1x8x128xf32> to vector<8x128xf32>
    %205 = arith.addf %202, %204 : vector<8x128xf32>
    %c5_144 = arith.constant 5 : index
    %c0_145 = arith.constant 0 : index
    %c0_146 = arith.constant 0 : index
    %206 = vector.load %arg4[%c5_144, %c0_145, %c0_146] : memref<8x16x128xf32, #tpu.memory_space<vmem>>, vector<1x8x128xf32>
    %207 = vector.shape_cast %206 : vector<1x8x128xf32> to vector<8x128xf32>
    %208 = vector.shape_cast %197 : vector<8x128xf32> to vector<1x8x128xf32>
    tpu.vector_store %arg4[%c5_144, %c0_145, %c0_146], %208 {strides = array<i32>} : memref<8x16x128xf32, #tpu.memory_space<vmem>>, vector<1x8x128xf32>,
    %c5_147 = arith.constant 5 : index
    %c8_148 = arith.constant 8 : index
    %c0_149 = arith.constant 0 : index
    %209 = vector.load %arg4[%c5_147, %c8_148, %c0_149] : memref<8x16x128xf32, #tpu.memory_space<vmem>>, vector<1x8x128xf32>
    %210 = vector.shape_cast %209 : vector<1x8x128xf32> to vector<8x128xf32>
    %211 = vector.shape_cast %205 : vector<8x128xf32> to vector<1x8x128xf32>
    tpu.vector_store %arg4[%c5_147, %c8_148, %c0_149], %211 {strides = array<i32>} : memref<8x16x128xf32, #tpu.memory_space<vmem>>, vector<1x8x128xf32>,
    %212 = arith.truncf %197 : vector<8x128xf32> to vector<8x128xbf16>
    %cst_150 = arith.constant dense<0.000000e+00> : vector<8x128xf32>
    %213 = tpu.matmul %212, %0, %cst_150 {dimension_numbers = #tpu.dot_dimension_numbers<[1], [0], [0], [1], [0, 0, 1, 1], [], []>} : vector<8x128xbf16>, vector<128x128xbf16>, vector<8x128xf32> -> vector<8x128xf32>
    %214 = arith.addf %213, %3 : vector<8x128xf32>
    %cst_151 = arith.constant 0.000000e+00 : f32
    %215 = vector.broadcast %cst_151 : f32 to vector<8x128xf32>
    %216 = arith.maximumf %214, %215 : vector<8x128xf32>
    %c4_152 = arith.constant 4 : index
    %c0_153 = arith.constant 0 : index
    %c0_154 = arith.constant 0 : index
    %217 = vector.load %arg4[%c4_152, %c0_153, %c0_154] : memref<8x16x128xf32, #tpu.memory_space<vmem>>, vector<1x8x128xf32>
    %218 = vector.shape_cast %217 : vector<1x8x128xf32> to vector<8x128xf32>
    %219 = arith.addf %216, %218 : vector<8x128xf32>
    %220 = arith.truncf %205 : vector<8x128xf32> to vector<8x128xbf16>
    %cst_155 = arith.constant dense<0.000000e+00> : vector<8x128xf32>
    %221 = tpu.matmul %220, %0, %cst_155 {dimension_numbers = #tpu.dot_dimension_numbers<[1], [0], [0], [1], [0, 0, 1, 1], [], []>} : vector<8x128xbf16>, vector<128x128xbf16>, vector<8x128xf32> -> vector<8x128xf32>
    %222 = arith.addf %221, %3 : vector<8x128xf32>
    %cst_156 = arith.constant 0.000000e+00 : f32
    %223 = vector.broadcast %cst_156 : f32 to vector<8x128xf32>
    %224 = arith.maximumf %222, %223 : vector<8x128xf32>
    %c4_157 = arith.constant 4 : index
    %c8_158 = arith.constant 8 : index
    %c0_159 = arith.constant 0 : index
    %225 = vector.load %arg4[%c4_157, %c8_158, %c0_159] : memref<8x16x128xf32, #tpu.memory_space<vmem>>, vector<1x8x128xf32>
    %226 = vector.shape_cast %225 : vector<1x8x128xf32> to vector<8x128xf32>
    %227 = arith.addf %224, %226 : vector<8x128xf32>
    %c4_160 = arith.constant 4 : index
    %c0_161 = arith.constant 0 : index
    %c0_162 = arith.constant 0 : index
    %228 = vector.load %arg4[%c4_160, %c0_161, %c0_162] : memref<8x16x128xf32, #tpu.memory_space<vmem>>, vector<1x8x128xf32>
    %229 = vector.shape_cast %228 : vector<1x8x128xf32> to vector<8x128xf32>
    %230 = vector.shape_cast %219 : vector<8x128xf32> to vector<1x8x128xf32>
    tpu.vector_store %arg4[%c4_160, %c0_161, %c0_162], %230 {strides = array<i32>} : memref<8x16x128xf32, #tpu.memory_space<vmem>>, vector<1x8x128xf32>,
    %c4_163 = arith.constant 4 : index
    %c8_164 = arith.constant 8 : index
    %c0_165 = arith.constant 0 : index
    %231 = vector.load %arg4[%c4_163, %c8_164, %c0_165] : memref<8x16x128xf32, #tpu.memory_space<vmem>>, vector<1x8x128xf32>
    %232 = vector.shape_cast %231 : vector<1x8x128xf32> to vector<8x128xf32>
    %233 = vector.shape_cast %227 : vector<8x128xf32> to vector<1x8x128xf32>
    tpu.vector_store %arg4[%c4_163, %c8_164, %c0_165], %233 {strides = array<i32>} : memref<8x16x128xf32, #tpu.memory_space<vmem>>, vector<1x8x128xf32>,
    %234 = arith.truncf %219 : vector<8x128xf32> to vector<8x128xbf16>
    %cst_166 = arith.constant dense<0.000000e+00> : vector<8x128xf32>
    %235 = tpu.matmul %234, %0, %cst_166 {dimension_numbers = #tpu.dot_dimension_numbers<[1], [0], [0], [1], [0, 0, 1, 1], [], []>} : vector<8x128xbf16>, vector<128x128xbf16>, vector<8x128xf32> -> vector<8x128xf32>
    %236 = arith.addf %235, %3 : vector<8x128xf32>
    %cst_167 = arith.constant 0.000000e+00 : f32
    %237 = vector.broadcast %cst_167 : f32 to vector<8x128xf32>
    %238 = arith.maximumf %236, %237 : vector<8x128xf32>
    %c3_168 = arith.constant 3 : index
    %c0_169 = arith.constant 0 : index
    %c0_170 = arith.constant 0 : index
    %239 = vector.load %arg4[%c3_168, %c0_169, %c0_170] : memref<8x16x128xf32, #tpu.memory_space<vmem>>, vector<1x8x128xf32>
    %240 = vector.shape_cast %239 : vector<1x8x128xf32> to vector<8x128xf32>
    %241 = arith.addf %238, %240 : vector<8x128xf32>
    %242 = arith.truncf %227 : vector<8x128xf32> to vector<8x128xbf16>
    %cst_171 = arith.constant dense<0.000000e+00> : vector<8x128xf32>
    %243 = tpu.matmul %242, %0, %cst_171 {dimension_numbers = #tpu.dot_dimension_numbers<[1], [0], [0], [1], [0, 0, 1, 1], [], []>} : vector<8x128xbf16>, vector<128x128xbf16>, vector<8x128xf32> -> vector<8x128xf32>
    %244 = arith.addf %243, %3 : vector<8x128xf32>
    %cst_172 = arith.constant 0.000000e+00 : f32
    %245 = vector.broadcast %cst_172 : f32 to vector<8x128xf32>
    %246 = arith.maximumf %244, %245 : vector<8x128xf32>
    %c3_173 = arith.constant 3 : index
    %c8_174 = arith.constant 8 : index
    %c0_175 = arith.constant 0 : index
    %247 = vector.load %arg4[%c3_173, %c8_174, %c0_175] : memref<8x16x128xf32, #tpu.memory_space<vmem>>, vector<1x8x128xf32>
    %248 = vector.shape_cast %247 : vector<1x8x128xf32> to vector<8x128xf32>
    %249 = arith.addf %246, %248 : vector<8x128xf32>
    %c3_176 = arith.constant 3 : index
    %c0_177 = arith.constant 0 : index
    %c0_178 = arith.constant 0 : index
    %250 = vector.load %arg4[%c3_176, %c0_177, %c0_178] : memref<8x16x128xf32, #tpu.memory_space<vmem>>, vector<1x8x128xf32>
    %251 = vector.shape_cast %250 : vector<1x8x128xf32> to vector<8x128xf32>
    %252 = vector.shape_cast %241 : vector<8x128xf32> to vector<1x8x128xf32>
    tpu.vector_store %arg4[%c3_176, %c0_177, %c0_178], %252 {strides = array<i32>} : memref<8x16x128xf32, #tpu.memory_space<vmem>>, vector<1x8x128xf32>,
    %c3_179 = arith.constant 3 : index
    %c8_180 = arith.constant 8 : index
    %c0_181 = arith.constant 0 : index
    %253 = vector.load %arg4[%c3_179, %c8_180, %c0_181] : memref<8x16x128xf32, #tpu.memory_space<vmem>>, vector<1x8x128xf32>
    %254 = vector.shape_cast %253 : vector<1x8x128xf32> to vector<8x128xf32>
    %255 = vector.shape_cast %249 : vector<8x128xf32> to vector<1x8x128xf32>
    tpu.vector_store %arg4[%c3_179, %c8_180, %c0_181], %255 {strides = array<i32>} : memref<8x16x128xf32, #tpu.memory_space<vmem>>, vector<1x8x128xf32>,
    %256 = arith.truncf %241 : vector<8x128xf32> to vector<8x128xbf16>
    %cst_182 = arith.constant dense<0.000000e+00> : vector<8x128xf32>
    %257 = tpu.matmul %256, %0, %cst_182 {dimension_numbers = #tpu.dot_dimension_numbers<[1], [0], [0], [1], [0, 0, 1, 1], [], []>} : vector<8x128xbf16>, vector<128x128xbf16>, vector<8x128xf32> -> vector<8x128xf32>
    %258 = arith.addf %257, %3 : vector<8x128xf32>
    %cst_183 = arith.constant 0.000000e+00 : f32
    %259 = vector.broadcast %cst_183 : f32 to vector<8x128xf32>
    %260 = arith.maximumf %258, %259 : vector<8x128xf32>
    %c2_184 = arith.constant 2 : index
    %c0_185 = arith.constant 0 : index
    %c0_186 = arith.constant 0 : index
    %261 = vector.load %arg4[%c2_184, %c0_185, %c0_186] : memref<8x16x128xf32, #tpu.memory_space<vmem>>, vector<1x8x128xf32>
    %262 = vector.shape_cast %261 : vector<1x8x128xf32> to vector<8x128xf32>
    %263 = arith.addf %260, %262 : vector<8x128xf32>
    %264 = arith.truncf %249 : vector<8x128xf32> to vector<8x128xbf16>
    %cst_187 = arith.constant dense<0.000000e+00> : vector<8x128xf32>
    %265 = tpu.matmul %264, %0, %cst_187 {dimension_numbers = #tpu.dot_dimension_numbers<[1], [0], [0], [1], [0, 0, 1, 1], [], []>} : vector<8x128xbf16>, vector<128x128xbf16>, vector<8x128xf32> -> vector<8x128xf32>
    %266 = arith.addf %265, %3 : vector<8x128xf32>
    %cst_188 = arith.constant 0.000000e+00 : f32
    %267 = vector.broadcast %cst_188 : f32 to vector<8x128xf32>
    %268 = arith.maximumf %266, %267 : vector<8x128xf32>
    %c2_189 = arith.constant 2 : index
    %c8_190 = arith.constant 8 : index
    %c0_191 = arith.constant 0 : index
    %269 = vector.load %arg4[%c2_189, %c8_190, %c0_191] : memref<8x16x128xf32, #tpu.memory_space<vmem>>, vector<1x8x128xf32>
    %270 = vector.shape_cast %269 : vector<1x8x128xf32> to vector<8x128xf32>
    %271 = arith.addf %268, %270 : vector<8x128xf32>
    %c2_192 = arith.constant 2 : index
    %c0_193 = arith.constant 0 : index
    %c0_194 = arith.constant 0 : index
    %272 = vector.load %arg4[%c2_192, %c0_193, %c0_194] : memref<8x16x128xf32, #tpu.memory_space<vmem>>, vector<1x8x128xf32>
    %273 = vector.shape_cast %272 : vector<1x8x128xf32> to vector<8x128xf32>
    %274 = vector.shape_cast %263 : vector<8x128xf32> to vector<1x8x128xf32>
    tpu.vector_store %arg4[%c2_192, %c0_193, %c0_194], %274 {strides = array<i32>} : memref<8x16x128xf32, #tpu.memory_space<vmem>>, vector<1x8x128xf32>,
    %c2_195 = arith.constant 2 : index
    %c8_196 = arith.constant 8 : index
    %c0_197 = arith.constant 0 : index
    %275 = vector.load %arg4[%c2_195, %c8_196, %c0_197] : memref<8x16x128xf32, #tpu.memory_space<vmem>>, vector<1x8x128xf32>
    %276 = vector.shape_cast %275 : vector<1x8x128xf32> to vector<8x128xf32>
    %277 = vector.shape_cast %271 : vector<8x128xf32> to vector<1x8x128xf32>
    tpu.vector_store %arg4[%c2_195, %c8_196, %c0_197], %277 {strides = array<i32>} : memref<8x16x128xf32, #tpu.memory_space<vmem>>, vector<1x8x128xf32>,
    %278 = arith.truncf %263 : vector<8x128xf32> to vector<8x128xbf16>
    %cst_198 = arith.constant dense<0.000000e+00> : vector<8x128xf32>
    %279 = tpu.matmul %278, %0, %cst_198 {dimension_numbers = #tpu.dot_dimension_numbers<[1], [0], [0], [1], [0, 0, 1, 1], [], []>} : vector<8x128xbf16>, vector<128x128xbf16>, vector<8x128xf32> -> vector<8x128xf32>
    %280 = arith.addf %279, %3 : vector<8x128xf32>
    %cst_199 = arith.constant 0.000000e+00 : f32
    %281 = vector.broadcast %cst_199 : f32 to vector<8x128xf32>
    %282 = arith.maximumf %280, %281 : vector<8x128xf32>
    %c1_200 = arith.constant 1 : index
    %c0_201 = arith.constant 0 : index
    %c0_202 = arith.constant 0 : index
    %283 = vector.load %arg4[%c1_200, %c0_201, %c0_202] : memref<8x16x128xf32, #tpu.memory_space<vmem>>, vector<1x8x128xf32>
    %284 = vector.shape_cast %283 : vector<1x8x128xf32> to vector<8x128xf32>
    %285 = arith.addf %282, %284 : vector<8x128xf32>
    %286 = arith.truncf %271 : vector<8x128xf32> to vector<8x128xbf16>
    %cst_203 = arith.constant dense<0.000000e+00> : vector<8x128xf32>
    %287 = tpu.matmul %286, %0, %cst_203 {dimension_numbers = #tpu.dot_dimension_numbers<[1], [0], [0], [1], [0, 0, 1, 1], [], []>} : vector<8x128xbf16>, vector<128x128xbf16>, vector<8x128xf32> -> vector<8x128xf32>
    %288 = arith.addf %287, %3 : vector<8x128xf32>
    %cst_204 = arith.constant 0.000000e+00 : f32
    %289 = vector.broadcast %cst_204 : f32 to vector<8x128xf32>
    %290 = arith.maximumf %288, %289 : vector<8x128xf32>
    %c1_205 = arith.constant 1 : index
    %c8_206 = arith.constant 8 : index
    %c0_207 = arith.constant 0 : index
    %291 = vector.load %arg4[%c1_205, %c8_206, %c0_207] : memref<8x16x128xf32, #tpu.memory_space<vmem>>, vector<1x8x128xf32>
    %292 = vector.shape_cast %291 : vector<1x8x128xf32> to vector<8x128xf32>
    %293 = arith.addf %290, %292 : vector<8x128xf32>
    %c1_208 = arith.constant 1 : index
    %c0_209 = arith.constant 0 : index
    %c0_210 = arith.constant 0 : index
    %294 = vector.load %arg4[%c1_208, %c0_209, %c0_210] : memref<8x16x128xf32, #tpu.memory_space<vmem>>, vector<1x8x128xf32>
    %295 = vector.shape_cast %294 : vector<1x8x128xf32> to vector<8x128xf32>
    %296 = vector.shape_cast %285 : vector<8x128xf32> to vector<1x8x128xf32>
    tpu.vector_store %arg4[%c1_208, %c0_209, %c0_210], %296 {strides = array<i32>} : memref<8x16x128xf32, #tpu.memory_space<vmem>>, vector<1x8x128xf32>,
    %c1_211 = arith.constant 1 : index
    %c8_212 = arith.constant 8 : index
    %c0_213 = arith.constant 0 : index
    %297 = vector.load %arg4[%c1_211, %c8_212, %c0_213] : memref<8x16x128xf32, #tpu.memory_space<vmem>>, vector<1x8x128xf32>
    %298 = vector.shape_cast %297 : vector<1x8x128xf32> to vector<8x128xf32>
    %299 = vector.shape_cast %293 : vector<8x128xf32> to vector<1x8x128xf32>
    tpu.vector_store %arg4[%c1_211, %c8_212, %c0_213], %299 {strides = array<i32>} : memref<8x16x128xf32, #tpu.memory_space<vmem>>, vector<1x8x128xf32>,
    %300 = arith.truncf %285 : vector<8x128xf32> to vector<8x128xbf16>
    %cst_214 = arith.constant dense<0.000000e+00> : vector<8x128xf32>
    %301 = tpu.matmul %300, %0, %cst_214 {dimension_numbers = #tpu.dot_dimension_numbers<[1], [0], [0], [1], [0, 0, 1, 1], [], []>} : vector<8x128xbf16>, vector<128x128xbf16>, vector<8x128xf32> -> vector<8x128xf32>
    %302 = arith.addf %301, %3 : vector<8x128xf32>
    %cst_215 = arith.constant 0.000000e+00 : f32
    %303 = vector.broadcast %cst_215 : f32 to vector<8x128xf32>
    %304 = arith.maximumf %302, %303 : vector<8x128xf32>
    %c0_216 = arith.constant 0 : index
    %c0_217 = arith.constant 0 : index
    %c0_218 = arith.constant 0 : index
    %305 = vector.load %arg4[%c0_216, %c0_217, %c0_218] : memref<8x16x128xf32, #tpu.memory_space<vmem>>, vector<1x8x128xf32>
    %306 = vector.shape_cast %305 : vector<1x8x128xf32> to vector<8x128xf32>
    %307 = arith.addf %304, %306 : vector<8x128xf32>
    %308 = arith.truncf %293 : vector<8x128xf32> to vector<8x128xbf16>
    %cst_219 = arith.constant dense<0.000000e+00> : vector<8x128xf32>
    %309 = tpu.matmul %308, %0, %cst_219 {dimension_numbers = #tpu.dot_dimension_numbers<[1], [0], [0], [1], [0, 0, 1, 1], [], []>} : vector<8x128xbf16>, vector<128x128xbf16>, vector<8x128xf32> -> vector<8x128xf32>
    %310 = arith.addf %309, %3 : vector<8x128xf32>
    %cst_220 = arith.constant 0.000000e+00 : f32
    %311 = vector.broadcast %cst_220 : f32 to vector<8x128xf32>
    %312 = arith.maximumf %310, %311 : vector<8x128xf32>
    %c0_221 = arith.constant 0 : index
    %c8_222 = arith.constant 8 : index
    %c0_223 = arith.constant 0 : index
    %313 = vector.load %arg4[%c0_221, %c8_222, %c0_223] : memref<8x16x128xf32, #tpu.memory_space<vmem>>, vector<1x8x128xf32>
    %314 = vector.shape_cast %313 : vector<1x8x128xf32> to vector<8x128xf32>
    %315 = arith.addf %312, %314 : vector<8x128xf32>
    %c0_224 = arith.constant 0 : index
    %c0_225 = arith.constant 0 : index
    %c0_226 = arith.constant 0 : index
    %316 = vector.load %arg4[%c0_224, %c0_225, %c0_226] : memref<8x16x128xf32, #tpu.memory_space<vmem>>, vector<1x8x128xf32>
    %317 = vector.shape_cast %316 : vector<1x8x128xf32> to vector<8x128xf32>
    %318 = vector.shape_cast %307 : vector<8x128xf32> to vector<1x8x128xf32>
    tpu.vector_store %arg4[%c0_224, %c0_225, %c0_226], %318 {strides = array<i32>} : memref<8x16x128xf32, #tpu.memory_space<vmem>>, vector<1x8x128xf32>,
    %c0_227 = arith.constant 0 : index
    %c8_228 = arith.constant 8 : index
    %c0_229 = arith.constant 0 : index
    %319 = vector.load %arg4[%c0_227, %c8_228, %c0_229] : memref<8x16x128xf32, #tpu.memory_space<vmem>>, vector<1x8x128xf32>
    %320 = vector.shape_cast %319 : vector<1x8x128xf32> to vector<8x128xf32>
    %321 = vector.shape_cast %315 : vector<8x128xf32> to vector<1x8x128xf32>
    tpu.vector_store %arg4[%c0_227, %c8_228, %c0_229], %321 {strides = array<i32>} : memref<8x16x128xf32, #tpu.memory_space<vmem>>, vector<1x8x128xf32>,
    return
  }
  func.func @transform_0(%arg0: i32) -> (i32, i32, i32) {
    %c0_i32 = arith.constant 0 : i32
    %c0_i32_0 = arith.constant 0 : i32
    %c0_i32_1 = arith.constant 0 : i32
    return %c0_i32, %arg0, %c0_i32_0 : i32, i32, i32
  }
  func.func @transform_1(%arg0: i32) -> (i32, i32) {
    %c0_i32 = arith.constant 0 : i32
    %c0_i32_0 = arith.constant 0 : i32
    %c0_i32_1 = arith.constant 0 : i32
    return %c0_i32, %c0_i32_0 : i32, i32
  }
  func.func @transform_2(%arg0: i32) -> (i32, i32) {
    %c0_i32 = arith.constant 0 : i32
    %c0_i32_0 = arith.constant 0 : i32
    %c0_i32_1 = arith.constant 0 : i32
    return %c0_i32, %c0_i32_0 : i32, i32
  }
  func.func @transform_3(%arg0: i32) -> (i32, i32, i32) {
    %c0_i32 = arith.constant 0 : i32
    %c0_i32_0 = arith.constant 0 : i32
    %c0_i32_1 = arith.constant 0 : i32
    return %c0_i32, %arg0, %c0_i32_0 : i32, i32, i32
  }
}

</mosaic_0001>

<llo_original>
// kernel: tpu_custom_call.1
$region0: #{tpu_custom_call.1}
  #allocation0 [shape = 'u32[]', space=smem, size = 0x4, offset = 0x4, fixed_abs, tag = 'smem constant byte address 0x4 - core index']
  #allocation1 [shape = 'u32[144,128]{1,0:T(1,128)}', space=vmem, size = 0x12000, scoped, tag = 'internal scratch']
  #allocation8 [shape = 's32[]', space=sflag, size = 0x4, offset = 0, fixed_abs, tag = 'sflag constant byte address 0x0 - dummy sync flag']
  #allocation10 [shape = 's32[]', space=sflag, size = 0x4, offset = 0, fixed_abs, tag = 'sflag constant byte address 0x0 - dummy sync flag']
  %s0 = inlined_call_operand.hbm [shape: f32[8,32,128], index: 0, kind: input, shape index: {}]
  %s1 = inlined_call_operand.hbm [shape: bf16[128,128], index: 1, kind: input, shape index: {}]
  %s2 = inlined_call_operand.vmem [shape: f32[1,128], index: 2, kind: input, shape index: {}]
  %s3 = inlined_call_operand.hbm [shape: f32[8,32,128], index: 3, kind: output, shape index: {}]
  %s4 = sld [smem:[#allocation0]]
  $region53: #{tpu_custom_call.1} parent=0
    _
  %s6 = ssub.s32 1, %s4
  %s7 = scalar_select 0, %s6, %s4
  $region1: #{tpu_custom_call.1} parent=0
    #allocation2 [shape = 'u8[131072]{0}', space=vmem, size = 0x20000, scoped, tag = 'input window, operand 0']
    #allocation3 [shape = 's32[2]{0}', space=sflag, size = 0x8, scoped, tag = 'scoped memory for tpu_custom_call.1']
    #allocation4 [shape = 's32[2]{0}', space=sflag, size = 0x8, scoped, tag = 'scoped memory for tpu_custom_call.1']
    #allocation5 [shape = 'u8[32768]{0}', space=vmem, size = 0x8000, scoped, tag = 'input window, operand 1, single buffered']
    #allocation6 [shape = 's32[1]{0}', space=sflag, size = 0x4, scoped, tag = 'scoped memory for tpu_custom_call.1']
    #allocation7 [shape = 'u8[131072]{0}', space=vmem, size = 0x20000, scoped, tag = 'output window, operand 0']
    %8 = vsyncpa [#allocation3], 0
    %s9 = scalar_lea.sflag [#allocation3], 1
    %10 = vsyncpa %s9, 0
    %11 = vsyncpa [#allocation6], 0
    %12 = vsyncpa [#allocation4], 0
    %s13 = scalar_lea.sflag [#allocation4], 1
    %14 = vsyncpa %s13, 0
    loop: start=0, step=1, limit=4
    $region2: #{tpu_custom_call.1} parent=1 // loop_pre_header
      _
    $region3: #{tpu_custom_call.1} parent=1 // loop_header
      %s16 = sphi 0, %s20
      %p17 = scmp.ge.s32.totalorder %s16, 4
      %s26 = sphi 0, %s28
      %s29 = sphi 0, %s26
      %s30 = sphi 0, %s29
      %s46 = sphi 0, %s30
      %s50 = sphi 0, %s50
      %s52 = sphi 0, %s50
      %s53 = sphi 0, %s52
      %s67 = sphi 0, %s53
      %s71 = sphi 0, %s71
      %s73 = sphi 0, %s71
      %s74 = sphi 0, %s73
      %s88 = sphi 0, %s74
      %s94 = sphi 0, %s96
      %s97 = sphi 0, %s94
      %s98 = sphi 0, %s97
      %s114 = sphi 0, %s98
    $region4: #{tpu_custom_call.1} parent=1 // loop_header_branch
      %19 = sbr.rel (%p17) target = $region8
    $region5: #{tpu_custom_call.1} parent=1 // loop_body
      %s21 = ssub.s32 %s16, 1
      %s22 = ssub.s32 %s16, 2
      %s23 = sadd.s32 %s16, 1
      %s24 = ssub.s32 %s16, %s23
      %p25 = scmp.eq.s32.totalorder %s24, 0
      %s27 = sadd.s32 %s26, 1
      %s28 = scalar_select %p25, %s26, %s27
      %p31 = pneg %p25
      %p32 = scmp.eq.s32.totalorder %s16, 1
      %p33 = por %p31, %p32
      %p34 = scmp.ne.s32.totalorder %s26, %s29
      %p35 = scmp.eq.s32.totalorder %s16, 0
      %p36 = por %p34, %p35
      %p37 = scmp.ne.s32.totalorder %s26, %s29
      %p38 = scmp.eq.s32.totalorder %s21, 1
      %p39 = por %p37, %p38
      %p40 = scmp.ne.s32.totalorder %s29, %s30
      %p41 = scmp.eq.s32.totalorder %s21, 0
      %p42 = por %p40, %p41
      %p43 = scmp.ne.s32.totalorder %s29, %s30
      %p44 = scmp.eq.s32.totalorder %s22, 1
      %p45 = por %p43, %p44
      %p47 = scmp.ne.s32.totalorder %s30, %s46
      %p48 = scmp.eq.s32.totalorder %s22, 0
      %p49 = por %p47, %p48
      %s51 = sadd.s32 %s50, 1
      %p54 = scmp.eq.s32.totalorder %s16, 1
      %p55 = scmp.ne.s32.totalorder %s50, %s52
      %p56 = scmp.eq.s32.totalorder %s16, 0
      %p57 = por %p55, %p56
      %p58 = scmp.ne.s32.totalorder %s50, %s52
      %p59 = scmp.eq.s32.totalorder %s21, 1
      %p60 = por %p58, %p59
      %p61 = scmp.ne.s32.totalorder %s52, %s53
      %p62 = scmp.eq.s32.totalorder %s21, 0
      %p63 = por %p61, %p62
      %p64 = scmp.ne.s32.totalorder %s52, %s53
      %p65 = scmp.eq.s32.totalorder %s22, 1
      %p66 = por %p64, %p65
      %p68 = scmp.ne.s32.totalorder %s53, %s67
      %p69 = scmp.eq.s32.totalorder %s22, 0
      %p70 = por %p68, %p69
      %s72 = sadd.s32 %s71, 1
      %p75 = scmp.eq.s32.totalorder %s16, 1
      %p76 = scmp.ne.s32.totalorder %s71, %s73
      %p77 = scmp.eq.s32.totalorder %s16, 0
      %p78 = por %p76, %p77
      %p79 = scmp.ne.s32.totalorder %s71, %s73
      %p80 = scmp.eq.s32.totalorder %s21, 1
      %p81 = por %p79, %p80
      %p82 = scmp.ne.s32.totalorder %s73, %s74
      %p83 = scmp.eq.s32.totalorder %s21, 0
      %p84 = por %p82, %p83
      %p85 = scmp.ne.s32.totalorder %s73, %s74
      %p86 = scmp.eq.s32.totalorder %s22, 1
      %p87 = por %p85, %p86
      %p89 = scmp.ne.s32.totalorder %s74, %s88
      %p90 = scmp.eq.s32.totalorder %s22, 0
      %p91 = por %p89, %p90
      %s92 = ssub.s32 %s16, %s23
      %p93 = scmp.eq.s32.totalorder %s92, 0
      %s95 = sadd.s32 %s94, 1
      %s96 = scalar_select %p93, %s94, %s95
      %p99 = pneg %p93
      %p100 = scmp.eq.s32.totalorder %s16, 1
      %p101 = por %p99, %p100
      %p102 = scmp.ne.s32.totalorder %s94, %s97
      %p103 = scmp.eq.s32.totalorder %s16, 0
      %p104 = por %p102, %p103
      %p105 = scmp.ne.s32.totalorder %s94, %s97
      %p106 = scmp.eq.s32.totalorder %s21, 1
      %p107 = por %p105, %p106
      %p108 = scmp.ne.s32.totalorder %s97, %s98
      %p109 = scmp.eq.s32.totalorder %s21, 0
      %p110 = por %p108, %p109
      %p111 = scmp.ne.s32.totalorder %s97, %s98
      %p112 = scmp.eq.s32.totalorder %s22, 1
      %p113 = por %p111, %p112
      %p115 = scmp.ne.s32.totalorder %s98, %s114
      %p116 = scmp.eq.s32.totalorder %s22, 0
      %p117 = por %p115, %p116
      %p118 = scmp.le.s32.totalorder 1, %s16
      %p119 = scmp.lt.s32.totalorder %s16, 3
      %p120 = pnand %p118, %p119
      %p121 = pneg %p120
      // Predicated region
      $region9: #{tpu_custom_call.1} parent=5 // pred_check
        _
      $region10: #{tpu_custom_call.1} parent=5 // pred_check_branch
        %123 = sbr.rel (%p120) target = $region12
      $region11: #{tpu_custom_call.1} parent=5 // pred_region
        %s124 = ssub.s32 %s16, 1
        // Predicated region
        $region13: #{tpu_custom_call.1} parent=11 // pred_check
          %p125 = pneg %p63
        $region14: #{tpu_custom_call.1} parent=11 // pred_check_branch
          %127 = sbr.rel (%p125) target = $region16
        $region15: #{tpu_custom_call.1} parent=11 // pred_region
          %s129 = ssub.s32 1024, 1024
          %130 = vsyncadd [#allocation6], %s129
          %s131 = sshll.u32 [#allocation5], 4
          %s132 = int_to_ptr.vmem [resolvable:$true] %s131
          %137 = dma.hbm_to_vmem [thread:$0]  %s1, 1024, %s132, [#allocation6], 64, 64, 4
        $region16: #{tpu_custom_call.1} parent=11 // pred_fallthru
          _
        // Predicated region
        $region17: #{tpu_custom_call.1} parent=11 // pred_check
          %p138 = pneg %p84
        $region18: #{tpu_custom_call.1} parent=11 // pred_check_branch
          %140 = sbr.rel (%p138) target = $region20
        $region19: #{tpu_custom_call.1} parent=11 // pred_region
          _
        $region20: #{tpu_custom_call.1} parent=11 // pred_fallthru
          _
      $region12: #{tpu_custom_call.1} parent=5 // pred_fallthru
        _
      %p141 = scmp.lt.s32.totalorder %s16, 2
      // Predicated region
      $region21: #{tpu_custom_call.1} parent=5 // pred_check
        %p142 = pneg %p141
      $region22: #{tpu_custom_call.1} parent=5 // pred_check_branch
        %144 = sbr.rel (%p142) target = $region24
      $region23: #{tpu_custom_call.1} parent=5 // pred_region
        // Predicated region
        $region25: #{tpu_custom_call.1} parent=23 // pred_check
          %p145 = pneg %p36
        $region26: #{tpu_custom_call.1} parent=23 // pred_check_branch
          %147 = sbr.rel (%p145) target = $region28
        $region27: #{tpu_custom_call.1} parent=23 // pred_region
          #allocation9 [shape = 'u32[6]{0}', space=smem, size = 0x18, scoped, tag = 'DMA stride descriptor']
          %s148 = sand.u32 %s26, 1
          %s149 = scalar_lea.sflag [#allocation3], %s148
          %s150 = sand.u32 %s26, 1
          %s151 = smul.addr %s150, 128
          %s152 = scalar_lea.vmem [#allocation2], %s151
          %s153 = smul.u32 2, %s16
          %s155 = ssub.s32 2048, 2048
          %156 = vsyncadd %s149, %s155
          %s157 = smul.addr %s153, 128
          %s158 = scalar_lea.hbm %s0, %s157
          %s160 = sshll.u32 1, 14
          %s161 = sxor.u32 4294967295, %s160
          %s163 = sld [smem:[#allocation0]]
          %s164 = sadd.s32 2, %s163
          %s166 = sshll.u32 7, 26
          %s167 = sxor.u32 4294967295, %s166
          %s168 = sand.u32 0, %s167
          %s169 = sshll.u32 %s164, 26
          %s170 = sor.u32 %s168, %s169
          %s171 = sshll.u32 %s152, 4
          %s172 = int_to_ptr.vmem [resolvable:$true] %s171
          %178 = sst [smem:[#allocation9]] 512
          %s179 = scalar_lea.smem [#allocation9], 1
          %180 = sst [smem:[%s179]] 256
          %s181 = scalar_lea.smem [#allocation9], 2
          %182 = sst [smem:[%s181]] 2
          %s183 = scalar_lea.smem [#allocation9], 3
          %184 = sst [smem:[%s183]] 128
          %s185 = scalar_lea.smem [#allocation9], 4
          %186 = sst [smem:[%s185]] 128
          %s187 = scalar_lea.smem [#allocation9], 5
          %188 = sst [smem:[%s187]] 8
          %190 = dma.general %s158, 2048, %s172, %s149, [#allocation8], [#allocation9], %s170, 0
        $region28: #{tpu_custom_call.1} parent=23 // pred_fallthru
          _
      $region24: #{tpu_custom_call.1} parent=5 // pred_fallthru
        _
      %p191 = scmp.le.s32.totalorder 1, %s16
      %p192 = scmp.lt.s32.totalorder %s16, 3
      %p193 = pnand %p191, %p192
      %p194 = pneg %p193
      // Predicated region
      $region29: #{tpu_custom_call.1} parent=5 // pred_check
        _
      $region30: #{tpu_custom_call.1} parent=5 // pred_check_branch
        %196 = sbr.rel (%p193) target = $region32
      $region31: #{tpu_custom_call.1} parent=5 // pred_region
        %s197 = ssub.s32 %s16, 1
        %s198 = sand.u32 %s29, 1
        %s199 = scalar_lea.sflag [#allocation3], %s198
        %s200 = sand.u32 %s29, 1
        %s201 = smul.addr %s200, 128
        %s202 = scalar_lea.vmem [#allocation2], %s201
        // Predicated region
        $region33: #{tpu_custom_call.1} parent=31 // pred_check
          %p203 = pneg %p42
        $region34: #{tpu_custom_call.1} parent=31 // pred_check_branch
          %205 = sbr.rel (%p203) target = $region36
        $region35: #{tpu_custom_call.1} parent=31 // pred_region
          %206 = dma.done %s199, 2048
        $region36: #{tpu_custom_call.1} parent=31 // pred_fallthru
          _
        // Predicated region
        $region37: #{tpu_custom_call.1} parent=31 // pred_check
          %p207 = pneg %p63
        $region38: #{tpu_custom_call.1} parent=31 // pred_check_branch
          %209 = sbr.rel (%p207) target = $region40
        $region39: #{tpu_custom_call.1} parent=31 // pred_region
          %210 = dma.done [#allocation6], 1024
        $region40: #{tpu_custom_call.1} parent=31 // pred_fallthru
          _
        %s211 = sand.u32 %s29, 1
        %s212 = scalar_lea.sflag [#allocation3], %s211
        %s213 = sand.u32 %s29, 1
        %s214 = smul.addr %s213, 128
        %s215 = scalar_lea.vmem [#allocation2], %s214
        %p216 = pneg %p42
        %p217 = pneg %p39
        %p218 = pneg %p63
        %p219 = pneg %p60
        %p220 = pneg %p84
        %p221 = pneg %p81
        %p222 = pneg %p110
        %p223 = pneg %p107
        %s224 = sand.u32 %s97, 1
        %s225 = scalar_lea.sflag [#allocation4], %s224
        %s226 = sand.u32 %s97, 1
        %s227 = smul.addr %s226, 128
        %s228 = scalar_lea.vmem [#allocation7], %s227
        %s229 = smul.u32 2, %s21
        %s230 = smul.u32 2, %s21
        %v232 = vld [vmem:[#allocation5] sm:$0xf]
        %v233 = vld [vmem:[#allocation5 + $0x4] sm:$0xf]
        %v234 = vld [vmem:[#allocation5 + $0x8] sm:$0xf]
        %v235 = vld [vmem:[#allocation5 + $0xc] sm:$0xf]
        %v236 = vld [vmem:[#allocation5 + $0x10] sm:$0xf]
        %v237 = vld [vmem:[#allocation5 + $0x14] sm:$0xf]
        %v238 = vld [vmem:[#allocation5 + $0x18] sm:$0xf]
        %v239 = vld [vmem:[#allocation5 + $0x1c] sm:$0xf]
        %v240 = vld [vmem:[#allocation5 + $0x20] sm:$0xf]
        %v241 = vld [vmem:[#allocation5 + $0x24] sm:$0xf]
        %v242 = vld [vmem:[#allocation5 + $0x28] sm:$0xf]
        %v243 = vld [vmem:[#allocation5 + $0x2c] sm:$0xf]
        %v244 = vld [vmem:[#allocation5 + $0x30] sm:$0xf]
        %v245 = vld [vmem:[#allocation5 + $0x34] sm:$0xf]
        %v246 = vld [vmem:[#allocation5 + $0x38] sm:$0xf]
        %v247 = vld [vmem:[#allocation5 + $0x3c] sm:$0xf]
        %v248 = vld [vmem:[%s2] sm:$0x1]
        %v250 = vlaneseq
        %v251 = vshrl.u32 %v250, 7
        %v252 = vsub.s32 0, %v251
        %v253 = vrot.slane %v248, %v252
        %v255 = vld [vmem:[%s202] sm:$0xff]
        %v256 = vld [vmem:[%s202 + $0x8] sm:$0xff]
        %257 = vst [vmem:[%s228] sm:$0xff] %v255
        %258 = vst [vmem:[%s228 + $0x8] sm:$0xff] %v256
        %v259 = vpack.c.bf16 %v255, %v255
        %v276 = vunpack.c.l.b16 %v232
        %v277 = vunpack.c.l.b16 %v233
        %v278 = vunpack.c.l.b16 %v234
        %v279 = vunpack.c.l.b16 %v235
        %v280 = vunpack.c.l.b16 %v236
        %v281 = vunpack.c.l.b16 %v237
        %v282 = vunpack.c.l.b16 %v238
        %v283 = vunpack.c.l.b16 %v239
        %v284 = vunpack.c.l.b16 %v240
        %v285 = vunpack.c.l.b16 %v241
        %v286 = vunpack.c.l.b16 %v242
        %v287 = vunpack.c.l.b16 %v243
        %v288 = vunpack.c.l.b16 %v244
        %v289 = vunpack.c.l.b16 %v245
        %v290 = vunpack.c.l.b16 %v246
        %v291 = vunpack.c.l.b16 %v247
        %v292 = vpack.c.b16 %v277, %v276
        %v293 = vpack.c.b16 %v279, %v278
        %v294 = vpack.c.b16 %v281, %v280
        %v295 = vpack.c.b16 %v283, %v282
        %v296 = vpack.c.b16 %v285, %v284
        %v297 = vpack.c.b16 %v287, %v286
        %v298 = vpack.c.b16 %v289, %v288
        %v299 = vpack.c.b16 %v291, %v290
        %308 = vmatprep.subr.bf16.mxu0 0
        %309 = vmatpush1.bf16.msra.mxu0 %v292
        %310 = vmatprep.subr.bf16.mxu0 0
        %311 = vmatpush1.bf16.msra.mxu0 %v293
        %312 = vmatprep.subr.bf16.mxu0 0
        %313 = vmatpush1.bf16.msra.mxu0 %v294
        %314 = vmatprep.subr.bf16.mxu0 0
        %315 = vmatpush1.bf16.msra.mxu0 %v295
        %316 = vmatprep.subr.bf16.mxu0 0
        %317 = vmatpush1.bf16.msra.mxu0 %v296
        %318 = vmatprep.subr.bf16.mxu0 0
        %319 = vmatpush1.bf16.msra.mxu0 %v297
        %320 = vmatprep.subr.bf16.mxu0 0
        %321 = vmatpush1.bf16.msra.mxu0 %v298
        %322 = vmatprep.subr.bf16.mxu0 0
        %323 = vmatpush1.bf16.msra.mxu0 %v299
        %324 = vmatprep.subr.bf16.mxu0 0
        %325 = vmatpush1.bf16.msra.mxu0 0
        %326 = vmatprep.subr.bf16.mxu0 0
        %327 = vmatpush1.bf16.msra.mxu0 0
        %328 = vmatprep.subr.bf16.mxu0 0
        %329 = vmatpush1.bf16.msra.mxu0 0
        %330 = vmatprep.subr.bf16.mxu0 0
        %331 = vmatpush1.bf16.msra.mxu0 0
        %332 = vmatprep.subr.bf16.mxu0 0
        %333 = vmatpush1.bf16.msra.mxu0 0
        %334 = vmatprep.subr.bf16.mxu0 0
        %335 = vmatpush1.bf16.msra.mxu0 0
        %336 = vmatprep.subr.bf16.mxu0 0
        %337 = vmatpush1.bf16.msra.mxu0 0
        %338 = vmatprep.subr.bf16.mxu0 0
        %339 = vmatpush1.bf16.msra.mxu0 0
        %340 = vmatprep.mubr.bf16.mxu0 0
        %341 = vmatmul.mubr.bf16.gmra.mrb[0].mxu0 %v259
        %v342 = vpop.f32.mrb[0].mxu0
        %v343 = vadd.f32 %v253, %v342
        %v344 = vpop.f32.mrb[0].mxu0
        %v345 = vpop.f32.mrb[0].mxu0
        %v346 = vpop.f32.mrb[0].mxu0
        %347 = vdwg.mxu0
        %v348 = vmax.f32 %v343, 0.0
        %s349 = scalar_lea.vmem %s202, 16 [#allocation2]
        %v350 = vld [vmem:[%s349] sm:$0xff]
        %v351 = vadd.f32 %v348, %v350
        %v352 = vpack.c.bf16 %v256, %v256
        %353 = vmatprep.subr.bf16.mxu0 0
        %354 = vmatpush1.bf16.msra.mxu0 %v292
        %355 = vmatprep.subr.bf16.mxu0 0
        %356 = vmatpush1.bf16.msra.mxu0 %v293
        %357 = vmatprep.subr.bf16.mxu0 0
        %358 = vmatpush1.bf16.msra.mxu0 %v294
        %359 = vmatprep.subr.bf16.mxu0 0
        %360 = vmatpush1.bf16.msra.mxu0 %v295
        %361 = vmatprep.subr.bf16.mxu0 0
        %362 = vmatpush1.bf16.msra.mxu0 %v296
        %363 = vmatprep.subr.bf16.mxu0 0
        %364 = vmatpush1.bf16.msra.mxu0 %v297
        %365 = vmatprep.subr.bf16.mxu0 0
        %366 = vmatpush1.bf16.msra.mxu0 %v298
        %367 = vmatprep.subr.bf16.mxu0 0
        %368 = vmatpush1.bf16.msra.mxu0 %v299
        %369 = vmatprep.subr.bf16.mxu0 0
        %370 = vmatpush1.bf16.msra.mxu0 0
        %371 = vmatprep.subr.bf16.mxu0 0
        %372 = vmatpush1.bf16.msra.mxu0 0
        %373 = vmatprep.subr.bf16.mxu0 0
        %374 = vmatpush1.bf16.msra.mxu0 0
        %375 = vmatprep.subr.bf16.mxu0 0
        %376 = vmatpush1.bf16.msra.mxu0 0
        %377 = vmatprep.subr.bf16.mxu0 0
        %378 = vmatpush1.bf16.msra.mxu0 0
        %379 = vmatprep.subr.bf16.mxu0 0
        %380 = vmatpush1.bf16.msra.mxu0 0
        %381 = vmatprep.subr.bf16.mxu0 0
        %382 = vmatpush1.bf16.msra.mxu0 0
        %383 = vmatprep.subr.bf16.mxu0 0
        %384 = vmatpush1.bf16.msra.mxu0 0
        %385 = vmatprep.mubr.bf16.mxu0 0
        %386 = vmatmul.mubr.bf16.gmra.mrb[0].mxu0 %v352
        %v387 = vpop.f32.mrb[0].mxu0
        %v388 = vadd.f32 %v253, %v387
        %v389 = vpop.f32.mrb[0].mxu0
        %v390 = vpop.f32.mrb[0].mxu0
        %v391 = vpop.f32.mrb[0].mxu0
        %392 = vdwg.mxu0
        %v393 = vmax.f32 %v388, 0.0
        %v394 = vld [vmem:[%s349 + $0x8] sm:$0xff]
        %v395 = vadd.f32 %v393, %v394
        %s396 = scalar_lea.vmem %s228, 16 [#allocation7]
        %397 = vst [vmem:[%s396] sm:$0xff] %v351
        %398 = vst [vmem:[%s396 + $0x8] sm:$0xff] %v395
        %v399 = vpack.c.bf16 %v351, %v351
        %400 = vmatprep.subr.bf16.mxu0 0
        %401 = vmatpush1.bf16.msra.mxu0 %v292
        %402 = vmatprep.subr.bf16.mxu0 0
        %403 = vmatpush1.bf16.msra.mxu0 %v293
        %404 = vmatprep.subr.bf16.mxu0 0
        %405 = vmatpush1.bf16.msra.mxu0 %v294
        %406 = vmatprep.subr.bf16.mxu0 0
        %407 = vmatpush1.bf16.msra.mxu0 %v295
        %408 = vmatprep.subr.bf16.mxu0 0
        %409 = vmatpush1.bf16.msra.mxu0 %v296
        %410 = vmatprep.subr.bf16.mxu0 0
        %411 = vmatpush1.bf16.msra.mxu0 %v297
        %412 = vmatprep.subr.bf16.mxu0 0
        %413 = vmatpush1.bf16.msra.mxu0 %v298
        %414 = vmatprep.subr.bf16.mxu0 0
        %415 = vmatpush1.bf16.msra.mxu0 %v299
        %416 = vmatprep.subr.bf16.mxu0 0
        %417 = vmatpush1.bf16.msra.mxu0 0
        %418 = vmatprep.subr.bf16.mxu0 0
        %419 = vmatpush1.bf16.msra.mxu0 0
        %420 = vmatprep.subr.bf16.mxu0 0
        %421 = vmatpush1.bf16.msra.mxu0 0
        %422 = vmatprep.subr.bf16.mxu0 0
        %423 = vmatpush1.bf16.msra.mxu0 0
        %424 = vmatprep.subr.bf16.mxu0 0
        %425 = vmatpush1.bf16.msra.mxu0 0
        %426 = vmatprep.subr.bf16.mxu0 0
        %427 = vmatpush1.bf16.msra.mxu0 0
        %428 = vmatprep.subr.bf16.mxu0 0
        %429 = vmatpush1.bf16.msra.mxu0 0
        %430 = vmatprep.subr.bf16.mxu0 0
        %431 = vmatpush1.bf16.msra.mxu0 0
        %432 = vmatprep.mubr.bf16.mxu0 0
        %433 = vmatmul.mubr.bf16.gmra.mrb[0].mxu0 %v399
        %v434 = vpop.f32.mrb[0].mxu0
        %v435 = vadd.f32 %v253, %v434
        %v436 = vpop.f32.mrb[0].mxu0
        %v437 = vpop.f32.mrb[0].mxu0
        %v438 = vpop.f32.mrb[0].mxu0
        %439 = vdwg.mxu0
        %v440 = vmax.f32 %v435, 0.0
        %s441 = scalar_lea.vmem %s202, 32 [#allocation2]
        %v442 = vld [vmem:[%s441] sm:$0xff]
        %v443 = vadd.f32 %v440, %v442
        %v444 = vpack.c.bf16 %v395, %v395
        %445 = vmatprep.subr.bf16.mxu0 0
        %446 = vmatpush1.bf16.msra.mxu0 %v292
        %447 = vmatprep.subr.bf16.mxu0 0
        %448 = vmatpush1.bf16.msra.mxu0 %v293
        %449 = vmatprep.subr.bf16.mxu0 0
        %450 = vmatpush1.bf16.msra.mxu0 %v294
        %451 = vmatprep.subr.bf16.mxu0 0
        %452 = vmatpush1.bf16.msra.mxu0 %v295
        %453 = vmatprep.subr.bf16.mxu0 0
        %454 = vmatpush1.bf16.msra.mxu0 %v296
        %455 = vmatprep.subr.bf16.mxu0 0
        %456 = vmatpush1.bf16.msra.mxu0 %v297
        %457 = vmatprep.subr.bf16.mxu0 0
        %458 = vmatpush1.bf16.msra.mxu0 %v298
        %459 = vmatprep.subr.bf16.mxu0 0
        %460 = vmatpush1.bf16.msra.mxu0 %v299
        %461 = vmatprep.subr.bf16.mxu0 0
        %462 = vmatpush1.bf16.msra.mxu0 0
        %463 = vmatprep.subr.bf16.mxu0 0
        %464 = vmatpush1.bf16.msra.mxu0 0
        %465 = vmatprep.subr.bf16.mxu0 0
        %466 = vmatpush1.bf16.msra.mxu0 0
        %467 = vmatprep.subr.bf16.mxu0 0
        %468 = vmatpush1.bf16.msra.mxu0 0
        %469 = vmatprep.subr.bf16.mxu0 0
        %470 = vmatpush1.bf16.msra.mxu0 0
        %471 = vmatprep.subr.bf16.mxu0 0
        %472 = vmatpush1.bf16.msra.mxu0 0
        %473 = vmatprep.subr.bf16.mxu0 0
        %474 = vmatpush1.bf16.msra.mxu0 0
        %475 = vmatprep.subr.bf16.mxu0 0
        %476 = vmatpush1.bf16.msra.mxu0 0
        %477 = vmatprep.mubr.bf16.mxu0 0
        %478 = vmatmul.mubr.bf16.gmra.mrb[0].mxu0 %v444
        %v479 = vpop.f32.mrb[0].mxu0
        %v480 = vadd.f32 %v253, %v479
        %v481 = vpop.f32.mrb[0].mxu0
        %v482 = vpop.f32.mrb[0].mxu0
        %v483 = vpop.f32.mrb[0].mxu0
        %484 = vdwg.mxu0
        %v485 = vmax.f32 %v480, 0.0
        %v486 = vld [vmem:[%s441 + $0x8] sm:$0xff]
        %v487 = vadd.f32 %v485, %v486
        %s488 = scalar_lea.vmem %s228, 32 [#allocation7]
        %489 = vst [vmem:[%s488] sm:$0xff] %v443
        %490 = vst [vmem:[%s488 + $0x8] sm:$0xff] %v487
        %v491 = vpack.c.bf16 %v443, %v443
        %492 = vmatprep.subr.bf16.mxu0 0
        %493 = vmatpush1.bf16.msra.mxu0 %v292
        %494 = vmatprep.subr.bf16.mxu0 0
        %495 = vmatpush1.bf16.msra.mxu0 %v293
        %496 = vmatprep.subr.bf16.mxu0 0
        %497 = vmatpush1.bf16.msra.mxu0 %v294
        %498 = vmatprep.subr.bf16.mxu0 0
        %499 = vmatpush1.bf16.msra.mxu0 %v295
        %500 = vmatprep.subr.bf16.mxu0 0
        %501 = vmatpush1.bf16.msra.mxu0 %v296
        %502 = vmatprep.subr.bf16.mxu0 0
        %503 = vmatpush1.bf16.msra.mxu0 %v297
        %504 = vmatprep.subr.bf16.mxu0 0
        %505 = vmatpush1.bf16.msra.mxu0 %v298
        %506 = vmatprep.subr.bf16.mxu0 0
        %507 = vmatpush1.bf16.msra.mxu0 %v299
        %508 = vmatprep.subr.bf16.mxu0 0
        %509 = vmatpush1.bf16.msra.mxu0 0
        %510 = vmatprep.subr.bf16.mxu0 0
        %511 = vmatpush1.bf16.msra.mxu0 0
        %512 = vmatprep.subr.bf16.mxu0 0
        %513 = vmatpush1.bf16.msra.mxu0 0
        %514 = vmatprep.subr.bf16.mxu0 0
        %515 = vmatpush1.bf16.msra.mxu0 0
        %516 = vmatprep.subr.bf16.mxu0 0
        %517 = vmatpush1.bf16.msra.mxu0 0
        %518 = vmatprep.subr.bf16.mxu0 0
        %519 = vmatpush1.bf16.msra.mxu0 0
        %520 = vmatprep.subr.bf16.mxu0 0
        %521 = vmatpush1.bf16.msra.mxu0 0
        %522 = vmatprep.subr.bf16.mxu0 0
        %523 = vmatpush1.bf16.msra.mxu0 0
        %524 = vmatprep.mubr.bf16.mxu0 0
        %525 = vmatmul.mubr.bf16.gmra.mrb[0].mxu0 %v491
        %v526 = vpop.f32.mrb[0].mxu0
        %v527 = vadd.f32 %v253, %v526
        %v528 = vpop.f32.mrb[0].mxu0
        %v529 = vpop.f32.mrb[0].mxu0
        %v530 = vpop.f32.mrb[0].mxu0
        %531 = vdwg.mxu0
        %v532 = vmax.f32 %v527, 0.0
        %s533 = scalar_lea.vmem %s202, 48 [#allocation2]
        %v534 = vld [vmem:[%s533] sm:$0xff]
        %v535 = vadd.f32 %v532, %v534
        %v536 = vpack.c.bf16 %v487, %v487
        %537 = vmatprep.subr.bf16.mxu0 0
        %538 = vmatpush1.bf16.msra.mxu0 %v292
        %539 = vmatprep.subr.bf16.mxu0 0
        %540 = vmatpush1.bf16.msra.mxu0 %v293
        %541 = vmatprep.subr.bf16.mxu0 0
        %542 = vmatpush1.bf16.msra.mxu0 %v294
        %543 = vmatprep.subr.bf16.mxu0 0
        %544 = vmatpush1.bf16.msra.mxu0 %v295
        %545 = vmatprep.subr.bf16.mxu0 0
        %546 = vmatpush1.bf16.msra.mxu0 %v296
        %547 = vmatprep.subr.bf16.mxu0 0
        %548 = vmatpush1.bf16.msra.mxu0 %v297
        %549 = vmatprep.subr.bf16.mxu0 0
        %550 = vmatpush1.bf16.msra.mxu0 %v298
        %551 = vmatprep.subr.bf16.mxu0 0
        %552 = vmatpush1.bf16.msra.mxu0 %v299
        %553 = vmatprep.subr.bf16.mxu0 0
        %554 = vmatpush1.bf16.msra.mxu0 0
        %555 = vmatprep.subr.bf16.mxu0 0
        %556 = vmatpush1.bf16.msra.mxu0 0
        %557 = vmatprep.subr.bf16.mxu0 0
        %558 = vmatpush1.bf16.msra.mxu0 0
        %559 = vmatprep.subr.bf16.mxu0 0
        %560 = vmatpush1.bf16.msra.mxu0 0
        %561 = vmatprep.subr.bf16.mxu0 0
        %562 = vmatpush1.bf16.msra.mxu0 0
        %563 = vmatprep.subr.bf16.mxu0 0
        %564 = vmatpush1.bf16.msra.mxu0 0
        %565 = vmatprep.subr.bf16.mxu0 0
        %566 = vmatpush1.bf16.msra.mxu0 0
        %567 = vmatprep.subr.bf16.mxu0 0
        %568 = vmatpush1.bf16.msra.mxu0 0
        %569 = vmatprep.mubr.bf16.mxu0 0
        %570 = vmatmul.mubr.bf16.gmra.mrb[0].mxu0 %v536
        %v571 = vpop.f32.mrb[0].mxu0
        %v572 = vadd.f32 %v253, %v571
        %v573 = vpop.f32.mrb[0].mxu0
        %v574 = vpop.f32.mrb[0].mxu0
        %v575 = vpop.f32.mrb[0].mxu0
        %576 = vdwg.mxu0
        %v577 = vmax.f32 %v572, 0.0
        %v578 = vld [vmem:[%s533 + $0x8] sm:$0xff]
        %v579 = vadd.f32 %v577, %v578
        %s580 = scalar_lea.vmem %s228, 48 [#allocation7]
        %581 = vst [vmem:[%s580] sm:$0xff] %v535
        %582 = vst [vmem:[%s580 + $0x8] sm:$0xff] %v579
        %v583 = vpack.c.bf16 %v535, %v535
        %584 = vmatprep.subr.bf16.mxu0 0
        %585 = vmatpush1.bf16.msra.mxu0 %v292
        %586 = vmatprep.subr.bf16.mxu0 0
        %587 = vmatpush1.bf16.msra.mxu0 %v293
        %588 = vmatprep.subr.bf16.mxu0 0
        %589 = vmatpush1.bf16.msra.mxu0 %v294
        %590 = vmatprep.subr.bf16.mxu0 0
        %591 = vmatpush1.bf16.msra.mxu0 %v295
        %592 = vmatprep.subr.bf16.mxu0 0
        %593 = vmatpush1.bf16.msra.mxu0 %v296
        %594 = vmatprep.subr.bf16.mxu0 0
        %595 = vmatpush1.bf16.msra.mxu0 %v297
        %596 = vmatprep.subr.bf16.mxu0 0
        %597 = vmatpush1.bf16.msra.mxu0 %v298
        %598 = vmatprep.subr.bf16.mxu0 0
        %599 = vmatpush1.bf16.msra.mxu0 %v299
        %600 = vmatprep.subr.bf16.mxu0 0
        %601 = vmatpush1.bf16.msra.mxu0 0
        %602 = vmatprep.subr.bf16.mxu0 0
        %603 = vmatpush1.bf16.msra.mxu0 0
        %604 = vmatprep.subr.bf16.mxu0 0
        %605 = vmatpush1.bf16.msra.mxu0 0
        %606 = vmatprep.subr.bf16.mxu0 0
        %607 = vmatpush1.bf16.msra.mxu0 0
        %608 = vmatprep.subr.bf16.mxu0 0
        %609 = vmatpush1.bf16.msra.mxu0 0
        %610 = vmatprep.subr.bf16.mxu0 0
        %611 = vmatpush1.bf16.msra.mxu0 0
        %612 = vmatprep.subr.bf16.mxu0 0
        %613 = vmatpush1.bf16.msra.mxu0 0
        %614 = vmatprep.subr.bf16.mxu0 0
        %615 = vmatpush1.bf16.msra.mxu0 0
        %616 = vmatprep.mubr.bf16.mxu0 0
        %617 = vmatmul.mubr.bf16.gmra.mrb[0].mxu0 %v583
        %v618 = vpop.f32.mrb[0].mxu0
        %v619 = vadd.f32 %v253, %v618
        %v620 = vpop.f32.mrb[0].mxu0
        %v621 = vpop.f32.mrb[0].mxu0
        %v622 = vpop.f32.mrb[0].mxu0
        %623 = vdwg.mxu0
        %v624 = vmax.f32 %v619, 0.0
        %s625 = scalar_lea.vmem %s202, 64 [#allocation2]
        %v626 = vld [vmem:[%s625] sm:$0xff]
        %v627 = vadd.f32 %v624, %v626
        %v628 = vpack.c.bf16 %v579, %v579
        %629 = vmatprep.subr.bf16.mxu0 0
        %630 = vmatpush1.bf16.msra.mxu0 %v292
        %631 = vmatprep.subr.bf16.mxu0 0
        %632 = vmatpush1.bf16.msra.mxu0 %v293
        %633 = vmatprep.subr.bf16.mxu0 0
        %634 = vmatpush1.bf16.msra.mxu0 %v294
        %635 = vmatprep.subr.bf16.mxu0 0
        %636 = vmatpush1.bf16.msra.mxu0 %v295
        %637 = vmatprep.subr.bf16.mxu0 0
        %638 = vmatpush1.bf16.msra.mxu0 %v296
        %639 = vmatprep.subr.bf16.mxu0 0
        %640 = vmatpush1.bf16.msra.mxu0 %v297
        %641 = vmatprep.subr.bf16.mxu0 0
        %642 = vmatpush1.bf16.msra.mxu0 %v298
        %643 = vmatprep.subr.bf16.mxu0 0
        %644 = vmatpush1.bf16.msra.mxu0 %v299
        %645 = vmatprep.subr.bf16.mxu0 0
        %646 = vmatpush1.bf16.msra.mxu0 0
        %647 = vmatprep.subr.bf16.mxu0 0
        %648 = vmatpush1.bf16.msra.mxu0 0
        %649 = vmatprep.subr.bf16.mxu0 0
        %650 = vmatpush1.bf16.msra.mxu0 0
        %651 = vmatprep.subr.bf16.mxu0 0
        %652 = vmatpush1.bf16.msra.mxu0 0
        %653 = vmatprep.subr.bf16.mxu0 0
        %654 = vmatpush1.bf16.msra.mxu0 0
        %655 = vmatprep.subr.bf16.mxu0 0
        %656 = vmatpush1.bf16.msra.mxu0 0
        %657 = vmatprep.subr.bf16.mxu0 0
        %658 = vmatpush1.bf16.msra.mxu0 0
        %659 = vmatprep.subr.bf16.mxu0 0
        %660 = vmatpush1.bf16.msra.mxu0 0
        %661 = vmatprep.mubr.bf16.mxu0 0
        %662 = vmatmul.mubr.bf16.gmra.mrb[0].mxu0 %v628
        %v663 = vpop.f32.mrb[0].mxu0
        %v664 = vadd.f32 %v253, %v663
        %v665 = vpop.f32.mrb[0].mxu0
        %v666 = vpop.f32.mrb[0].mxu0
        %v667 = vpop.f32.mrb[0].mxu0
        %668 = vdwg.mxu0
        %v669 = vmax.f32 %v664, 0.0
        %v670 = vld [vmem:[%s625 + $0x8] sm:$0xff]
        %v671 = vadd.f32 %v669, %v670
        %s672 = scalar_lea.vmem %s228, 64 [#allocation7]
        %673 = vst [vmem:[%s672] sm:$0xff] %v627
        %674 = vst [vmem:[%s672 + $0x8] sm:$0xff] %v671
        %v675 = vpack.c.bf16 %v627, %v627
        %676 = vmatprep.subr.bf16.mxu0 0
        %677 = vmatpush1.bf16.msra.mxu0 %v292
        %678 = vmatprep.subr.bf16.mxu0 0
        %679 = vmatpush1.bf16.msra.mxu0 %v293
        %680 = vmatprep.subr.bf16.mxu0 0
        %681 = vmatpush1.bf16.msra.mxu0 %v294
        %682 = vmatprep.subr.bf16.mxu0 0
        %683 = vmatpush1.bf16.msra.mxu0 %v295
        %684 = vmatprep.subr.bf16.mxu0 0
        %685 = vmatpush1.bf16.msra.mxu0 %v296
        %686 = vmatprep.subr.bf16.mxu0 0
        %687 = vmatpush1.bf16.msra.mxu0 %v297
        %688 = vmatprep.subr.bf16.mxu0 0
        %689 = vmatpush1.bf16.msra.mxu0 %v298
        %690 = vmatprep.subr.bf16.mxu0 0
        %691 = vmatpush1.bf16.msra.mxu0 %v299
        %692 = vmatprep.subr.bf16.mxu0 0
        %693 = vmatpush1.bf16.msra.mxu0 0
        %694 = vmatprep.subr.bf16.mxu0 0
        %695 = vmatpush1.bf16.msra.mxu0 0
        %696 = vmatprep.subr.bf16.mxu0 0
        %697 = vmatpush1.bf16.msra.mxu0 0
        %698 = vmatprep.subr.bf16.mxu0 0
        %699 = vmatpush1.bf16.msra.mxu0 0
        %700 = vmatprep.subr.bf16.mxu0 0
        %701 = vmatpush1.bf16.msra.mxu0 0
        %702 = vmatprep.subr.bf16.mxu0 0
        %703 = vmatpush1.bf16.msra.mxu0 0
        %704 = vmatprep.subr.bf16.mxu0 0
        %705 = vmatpush1.bf16.msra.mxu0 0
        %706 = vmatprep.subr.bf16.mxu0 0
        %707 = vmatpush1.bf16.msra.mxu0 0
        %708 = vmatprep.mubr.bf16.mxu0 0
        %709 = vmatmul.mubr.bf16.gmra.mrb[0].mxu0 %v675
        %v710 = vpop.f32.mrb[0].mxu0
        %v711 = vadd.f32 %v253, %v710
        %v712 = vpop.f32.mrb[0].mxu0
        %v713 = vpop.f32.mrb[0].mxu0
        %v714 = vpop.f32.mrb[0].mxu0
        %715 = vdwg.mxu0
        %v716 = vmax.f32 %v711, 0.0
        %s717 = scalar_lea.vmem %s202, 80 [#allocation2]
        %v718 = vld [vmem:[%s717] sm:$0xff]
        %v719 = vadd.f32 %v716, %v718
        %v720 = vpack.c.bf16 %v671, %v671
        %721 = vmatprep.subr.bf16.mxu0 0
        %722 = vmatpush1.bf16.msra.mxu0 %v292
        %723 = vmatprep.subr.bf16.mxu0 0
        %724 = vmatpush1.bf16.msra.mxu0 %v293
        %725 = vmatprep.subr.bf16.mxu0 0
        %726 = vmatpush1.bf16.msra.mxu0 %v294
        %727 = vmatprep.subr.bf16.mxu0 0
        %728 = vmatpush1.bf16.msra.mxu0 %v295
        %729 = vmatprep.subr.bf16.mxu0 0
        %730 = vmatpush1.bf16.msra.mxu0 %v296
        %731 = vmatprep.subr.bf16.mxu0 0
        %732 = vmatpush1.bf16.msra.mxu0 %v297
        %733 = vmatprep.subr.bf16.mxu0 0
        %734 = vmatpush1.bf16.msra.mxu0 %v298
        %735 = vmatprep.subr.bf16.mxu0 0
        %736 = vmatpush1.bf16.msra.mxu0 %v299
        %737 = vmatprep.subr.bf16.mxu0 0
        %738 = vmatpush1.bf16.msra.mxu0 0
        %739 = vmatprep.subr.bf16.mxu0 0
        %740 = vmatpush1.bf16.msra.mxu0 0
        %741 = vmatprep.subr.bf16.mxu0 0
        %742 = vmatpush1.bf16.msra.mxu0 0
        %743 = vmatprep.subr.bf16.mxu0 0
        %744 = vmatpush1.bf16.msra.mxu0 0
        %745 = vmatprep.subr.bf16.mxu0 0
        %746 = vmatpush1.bf16.msra.mxu0 0
        %747 = vmatprep.subr.bf16.mxu0 0
        %748 = vmatpush1.bf16.msra.mxu0 0
        %749 = vmatprep.subr.bf16.mxu0 0
        %750 = vmatpush1.bf16.msra.mxu0 0
        %751 = vmatprep.subr.bf16.mxu0 0
        %752 = vmatpush1.bf16.msra.mxu0 0
        %753 = vmatprep.mubr.bf16.mxu0 0
        %754 = vmatmul.mubr.bf16.gmra.mrb[0].mxu0 %v720
        %v755 = vpop.f32.mrb[0].mxu0
        %v756 = vadd.f32 %v253, %v755
        %v757 = vpop.f32.mrb[0].mxu0
        %v758 = vpop.f32.mrb[0].mxu0
        %v759 = vpop.f32.mrb[0].mxu0
        %760 = vdwg.mxu0
        %v761 = vmax.f32 %v756, 0.0
        %v762 = vld [vmem:[%s717 + $0x8] sm:$0xff]
        %v763 = vadd.f32 %v761, %v762
        %s764 = scalar_lea.vmem %s228, 80 [#allocation7]
        %765 = vst [vmem:[%s764] sm:$0xff] %v719
        %766 = vst [vmem:[%s764 + $0x8] sm:$0xff] %v763
        %v767 = vpack.c.bf16 %v719, %v719
        %768 = vmatprep.subr.bf16.mxu0 0
        %769 = vmatpush1.bf16.msra.mxu0 %v292
        %770 = vmatprep.subr.bf16.mxu0 0
        %771 = vmatpush1.bf16.msra.mxu0 %v293
        %772 = vmatprep.subr.bf16.mxu0 0
        %773 = vmatpush1.bf16.msra.mxu0 %v294
        %774 = vmatprep.subr.bf16.mxu0 0
        %775 = vmatpush1.bf16.msra.mxu0 %v295
        %776 = vmatprep.subr.bf16.mxu0 0
        %777 = vmatpush1.bf16.msra.mxu0 %v296
        %778 = vmatprep.subr.bf16.mxu0 0
        %779 = vmatpush1.bf16.msra.mxu0 %v297
        %780 = vmatprep.subr.bf16.mxu0 0
        %781 = vmatpush1.bf16.msra.mxu0 %v298
        %782 = vmatprep.subr.bf16.mxu0 0
        %783 = vmatpush1.bf16.msra.mxu0 %v299
        %784 = vmatprep.subr.bf16.mxu0 0
        %785 = vmatpush1.bf16.msra.mxu0 0
        %786 = vmatprep.subr.bf16.mxu0 0
        %787 = vmatpush1.bf16.msra.mxu0 0
        %788 = vmatprep.subr.bf16.mxu0 0
        %789 = vmatpush1.bf16.msra.mxu0 0
        %790 = vmatprep.subr.bf16.mxu0 0
        %791 = vmatpush1.bf16.msra.mxu0 0
        %792 = vmatprep.subr.bf16.mxu0 0
        %793 = vmatpush1.bf16.msra.mxu0 0
        %794 = vmatprep.subr.bf16.mxu0 0
        %795 = vmatpush1.bf16.msra.mxu0 0
        %796 = vmatprep.subr.bf16.mxu0 0
        %797 = vmatpush1.bf16.msra.mxu0 0
        %798 = vmatprep.subr.bf16.mxu0 0
        %799 = vmatpush1.bf16.msra.mxu0 0
        %800 = vmatprep.mubr.bf16.mxu0 0
        %801 = vmatmul.mubr.bf16.gmra.mrb[0].mxu0 %v767
        %v802 = vpop.f32.mrb[0].mxu0
        %v803 = vadd.f32 %v253, %v802
        %v804 = vpop.f32.mrb[0].mxu0
        %v805 = vpop.f32.mrb[0].mxu0
        %v806 = vpop.f32.mrb[0].mxu0
        %807 = vdwg.mxu0
        %v808 = vmax.f32 %v803, 0.0
        %s809 = scalar_lea.vmem %s202, 96 [#allocation2]
        %v810 = vld [vmem:[%s809] sm:$0xff]
        %v811 = vadd.f32 %v808, %v810
        %v812 = vpack.c.bf16 %v763, %v763
        %813 = vmatprep.subr.bf16.mxu0 0
        %814 = vmatpush1.bf16.msra.mxu0 %v292
        %815 = vmatprep.subr.bf16.mxu0 0
        %816 = vmatpush1.bf16.msra.mxu0 %v293
        %817 = vmatprep.subr.bf16.mxu0 0
        %818 = vmatpush1.bf16.msra.mxu0 %v294
        %819 = vmatprep.subr.bf16.mxu0 0
        %820 = vmatpush1.bf16.msra.mxu0 %v295
        %821 = vmatprep.subr.bf16.mxu0 0
        %822 = vmatpush1.bf16.msra.mxu0 %v296
        %823 = vmatprep.subr.bf16.mxu0 0
        %824 = vmatpush1.bf16.msra.mxu0 %v297
        %825 = vmatprep.subr.bf16.mxu0 0
        %826 = vmatpush1.bf16.msra.mxu0 %v298
        %827 = vmatprep.subr.bf16.mxu0 0
        %828 = vmatpush1.bf16.msra.mxu0 %v299
        %829 = vmatprep.subr.bf16.mxu0 0
        %830 = vmatpush1.bf16.msra.mxu0 0
        %831 = vmatprep.subr.bf16.mxu0 0
        %832 = vmatpush1.bf16.msra.mxu0 0
        %833 = vmatprep.subr.bf16.mxu0 0
        %834 = vmatpush1.bf16.msra.mxu0 0
        %835 = vmatprep.subr.bf16.mxu0 0
        %836 = vmatpush1.bf16.msra.mxu0 0
        %837 = vmatprep.subr.bf16.mxu0 0
        %838 = vmatpush1.bf16.msra.mxu0 0
        %839 = vmatprep.subr.bf16.mxu0 0
        %840 = vmatpush1.bf16.msra.mxu0 0
        %841 = vmatprep.subr.bf16.mxu0 0
        %842 = vmatpush1.bf16.msra.mxu0 0
        %843 = vmatprep.subr.bf16.mxu0 0
        %844 = vmatpush1.bf16.msra.mxu0 0
        %845 = vmatprep.mubr.bf16.mxu0 0
        %846 = vmatmul.mubr.bf16.gmra.mrb[0].mxu0 %v812
        %v847 = vpop.f32.mrb[0].mxu0
        %v848 = vadd.f32 %v253, %v847
        %v849 = vpop.f32.mrb[0].mxu0
        %v850 = vpop.f32.mrb[0].mxu0
        %v851 = vpop.f32.mrb[0].mxu0
        %852 = vdwg.mxu0
        %v853 = vmax.f32 %v848, 0.0
        %v854 = vld [vmem:[%s809 + $0x8] sm:$0xff]
        %v855 = vadd.f32 %v853, %v854
        %s856 = scalar_lea.vmem %s228, 96 [#allocation7]
        %857 = vst [vmem:[%s856] sm:$0xff] %v811
        %858 = vst [vmem:[%s856 + $0x8] sm:$0xff] %v855
        %v859 = vpack.c.bf16 %v811, %v811
        %860 = vmatprep.subr.bf16.mxu0 0
        %861 = vmatpush1.bf16.msra.mxu0 %v292
        %862 = vmatprep.subr.bf16.mxu0 0
        %863 = vmatpush1.bf16.msra.mxu0 %v293
        %864 = vmatprep.subr.bf16.mxu0 0
        %865 = vmatpush1.bf16.msra.mxu0 %v294
        %866 = vmatprep.subr.bf16.mxu0 0
        %867 = vmatpush1.bf16.msra.mxu0 %v295
        %868 = vmatprep.subr.bf16.mxu0 0
        %869 = vmatpush1.bf16.msra.mxu0 %v296
        %870 = vmatprep.subr.bf16.mxu0 0
        %871 = vmatpush1.bf16.msra.mxu0 %v297
        %872 = vmatprep.subr.bf16.mxu0 0
        %873 = vmatpush1.bf16.msra.mxu0 %v298
        %874 = vmatprep.subr.bf16.mxu0 0
        %875 = vmatpush1.bf16.msra.mxu0 %v299
        %876 = vmatprep.subr.bf16.mxu0 0
        %877 = vmatpush1.bf16.msra.mxu0 0
        %878 = vmatprep.subr.bf16.mxu0 0
        %879 = vmatpush1.bf16.msra.mxu0 0
        %880 = vmatprep.subr.bf16.mxu0 0
        %881 = vmatpush1.bf16.msra.mxu0 0
        %882 = vmatprep.subr.bf16.mxu0 0
        %883 = vmatpush1.bf16.msra.mxu0 0
        %884 = vmatprep.subr.bf16.mxu0 0
        %885 = vmatpush1.bf16.msra.mxu0 0
        %886 = vmatprep.subr.bf16.mxu0 0
        %887 = vmatpush1.bf16.msra.mxu0 0
        %888 = vmatprep.subr.bf16.mxu0 0
        %889 = vmatpush1.bf16.msra.mxu0 0
        %890 = vmatprep.subr.bf16.mxu0 0
        %891 = vmatpush1.bf16.msra.mxu0 0
        %892 = vmatprep.mubr.bf16.mxu0 0
        %893 = vmatmul.mubr.bf16.gmra.mrb[0].mxu0 %v859
        %v894 = vpop.f32.mrb[0].mxu0
        %v895 = vadd.f32 %v253, %v894
        %v896 = vpop.f32.mrb[0].mxu0
        %v897 = vpop.f32.mrb[0].mxu0
        %v898 = vpop.f32.mrb[0].mxu0
        %899 = vdwg.mxu0
        %v900 = vmax.f32 %v895, 0.0
        %s901 = scalar_lea.vmem %s202, 112 [#allocation2]
        %v902 = vld [vmem:[%s901] sm:$0xff]
        %v903 = vadd.f32 %v900, %v902
        %v904 = vpack.c.bf16 %v855, %v855
        %905 = vmatprep.subr.bf16.mxu0 0
        %906 = vmatpush1.bf16.msra.mxu0 %v292
        %907 = vmatprep.subr.bf16.mxu0 0
        %908 = vmatpush1.bf16.msra.mxu0 %v293
        %909 = vmatprep.subr.bf16.mxu0 0
        %910 = vmatpush1.bf16.msra.mxu0 %v294
        %911 = vmatprep.subr.bf16.mxu0 0
        %912 = vmatpush1.bf16.msra.mxu0 %v295
        %913 = vmatprep.subr.bf16.mxu0 0
        %914 = vmatpush1.bf16.msra.mxu0 %v296
        %915 = vmatprep.subr.bf16.mxu0 0
        %916 = vmatpush1.bf16.msra.mxu0 %v297
        %917 = vmatprep.subr.bf16.mxu0 0
        %918 = vmatpush1.bf16.msra.mxu0 %v298
        %919 = vmatprep.subr.bf16.mxu0 0
        %920 = vmatpush1.bf16.msra.mxu0 %v299
        %921 = vmatprep.subr.bf16.mxu0 0
        %922 = vmatpush1.bf16.msra.mxu0 0
        %923 = vmatprep.subr.bf16.mxu0 0
        %924 = vmatpush1.bf16.msra.mxu0 0
        %925 = vmatprep.subr.bf16.mxu0 0
        %926 = vmatpush1.bf16.msra.mxu0 0
        %927 = vmatprep.subr.bf16.mxu0 0
        %928 = vmatpush1.bf16.msra.mxu0 0
        %929 = vmatprep.subr.bf16.mxu0 0
        %930 = vmatpush1.bf16.msra.mxu0 0
        %931 = vmatprep.subr.bf16.mxu0 0
        %932 = vmatpush1.bf16.msra.mxu0 0
        %933 = vmatprep.subr.bf16.mxu0 0
        %934 = vmatpush1.bf16.msra.mxu0 0
        %935 = vmatprep.subr.bf16.mxu0 0
        %936 = vmatpush1.bf16.msra.mxu0 0
        %937 = vmatprep.mubr.bf16.mxu0 0
        %938 = vmatmul.mubr.bf16.gmra.mrb[0].mxu0 %v904
        %v939 = vpop.f32.mrb[0].mxu0
        %v940 = vadd.f32 %v253, %v939
        %v941 = vpop.f32.mrb[0].mxu0
        %v942 = vpop.f32.mrb[0].mxu0
        %v943 = vpop.f32.mrb[0].mxu0
        %944 = vdwg.mxu0
        %v945 = vmax.f32 %v940, 0.0
        %v946 = vld [vmem:[%s901 + $0x8] sm:$0xff]
        %v947 = vadd.f32 %v945, %v946
        %s948 = scalar_lea.vmem %s228, 112 [#allocation7]
        %949 = vst [vmem:[%s948] sm:$0xff] %v903
        %950 = vst [vmem:[%s948 + $0x8] sm:$0xff] %v947
        %v951 = vpack.c.bf16 %v903, %v903
        %952 = vmatprep.subr.bf16.mxu0 0
        %953 = vmatpush1.bf16.msra.mxu0 %v292
        %954 = vmatprep.subr.bf16.mxu0 0
        %955 = vmatpush1.bf16.msra.mxu0 %v293
        %956 = vmatprep.subr.bf16.mxu0 0
        %957 = vmatpush1.bf16.msra.mxu0 %v294
        %958 = vmatprep.subr.bf16.mxu0 0
        %959 = vmatpush1.bf16.msra.mxu0 %v295
        %960 = vmatprep.subr.bf16.mxu0 0
        %961 = vmatpush1.bf16.msra.mxu0 %v296
        %962 = vmatprep.subr.bf16.mxu0 0
        %963 = vmatpush1.bf16.msra.mxu0 %v297
        %964 = vmatprep.subr.bf16.mxu0 0
        %965 = vmatpush1.bf16.msra.mxu0 %v298
        %966 = vmatprep.subr.bf16.mxu0 0
        %967 = vmatpush1.bf16.msra.mxu0 %v299
        %968 = vmatprep.subr.bf16.mxu0 0
        %969 = vmatpush1.bf16.msra.mxu0 0
        %970 = vmatprep.subr.bf16.mxu0 0
        %971 = vmatpush1.bf16.msra.mxu0 0
        %972 = vmatprep.subr.bf16.mxu0 0
        %973 = vmatpush1.bf16.msra.mxu0 0
        %974 = vmatprep.subr.bf16.mxu0 0
        %975 = vmatpush1.bf16.msra.mxu0 0
        %976 = vmatprep.subr.bf16.mxu0 0
        %977 = vmatpush1.bf16.msra.mxu0 0
        %978 = vmatprep.subr.bf16.mxu0 0
        %979 = vmatpush1.bf16.msra.mxu0 0
        %980 = vmatprep.subr.bf16.mxu0 0
        %981 = vmatpush1.bf16.msra.mxu0 0
        %982 = vmatprep.subr.bf16.mxu0 0
        %983 = vmatpush1.bf16.msra.mxu0 0
        %984 = vmatprep.mubr.bf16.mxu0 0
        %985 = vmatmul.mubr.bf16.gmra.mrb[0].mxu0 %v951
        %v986 = vpop.f32.mrb[0].mxu0
        %v987 = vadd.f32 %v253, %v986
        %v988 = vpop.f32.mrb[0].mxu0
        %v989 = vpop.f32.mrb[0].mxu0
        %v990 = vpop.f32.mrb[0].mxu0
        %991 = vdwg.mxu0
        %v992 = vmax.f32 %v987, 0.0
        %v993 = vld [vmem:[%s856] sm:$0xff]
        %v994 = vadd.f32 %v992, %v993
        %v995 = vpack.c.bf16 %v947, %v947
        %996 = vmatprep.subr.bf16.mxu0 0
        %997 = vmatpush1.bf16.msra.mxu0 %v292
        %998 = vmatprep.subr.bf16.mxu0 0
        %999 = vmatpush1.bf16.msra.mxu0 %v293
        %1000 = vmatprep.subr.bf16.mxu0 0
        %1001 = vmatpush1.bf16.msra.mxu0 %v294
        %1002 = vmatprep.subr.bf16.mxu0 0
        %1003 = vmatpush1.bf16.msra.mxu0 %v295
        %1004 = vmatprep.subr.bf16.mxu0 0
        %1005 = vmatpush1.bf16.msra.mxu0 %v296
        %1006 = vmatprep.subr.bf16.mxu0 0
        %1007 = vmatpush1.bf16.msra.mxu0 %v297
        %1008 = vmatprep.subr.bf16.mxu0 0
        %1009 = vmatpush1.bf16.msra.mxu0 %v298
        %1010 = vmatprep.subr.bf16.mxu0 0
        %1011 = vmatpush1.bf16.msra.mxu0 %v299
        %1012 = vmatprep.subr.bf16.mxu0 0
        %1013 = vmatpush1.bf16.msra.mxu0 0
        %1014 = vmatprep.subr.bf16.mxu0 0
        %1015 = vmatpush1.bf16.msra.mxu0 0
        %1016 = vmatprep.subr.bf16.mxu0 0
        %1017 = vmatpush1.bf16.msra.mxu0 0
        %1018 = vmatprep.subr.bf16.mxu0 0
        %1019 = vmatpush1.bf16.msra.mxu0 0
        %1020 = vmatprep.subr.bf16.mxu0 0
        %1021 = vmatpush1.bf16.msra.mxu0 0
        %1022 = vmatprep.subr.bf16.mxu0 0
        %1023 = vmatpush1.bf16.msra.mxu0 0
        %1024 = vmatprep.subr.bf16.mxu0 0
        %1025 = vmatpush1.bf16.msra.mxu0 0
        %1026 = vmatprep.subr.bf16.mxu0 0
        %1027 = vmatpush1.bf16.msra.mxu0 0
        %1028 = vmatprep.mubr.bf16.mxu0 0
        %1029 = vmatmul.mubr.bf16.gmra.mrb[0].mxu0 %v995
        %v1030 = vpop.f32.mrb[0].mxu0
        %v1031 = vadd.f32 %v253, %v1030
        %v1032 = vpop.f32.mrb[0].mxu0
        %v1033 = vpop.f32.mrb[0].mxu0
        %v1034 = vpop.f32.mrb[0].mxu0
        %1035 = vdwg.mxu0
        %v1036 = vmax.f32 %v1031, 0.0
        %v1037 = vld [vmem:[%s856 + $0x8] sm:$0xff]
        %v1038 = vadd.f32 %v1036, %v1037
        %1039 = vst [vmem:[%s856] sm:$0xff] %v994
        %1040 = vst [vmem:[%s856 + $0x8] sm:$0xff] %v1038
        %v1041 = vpack.c.bf16 %v994, %v994
        %1042 = vmatprep.subr.bf16.mxu0 0
        %1043 = vmatpush1.bf16.msra.mxu0 %v292
        %1044 = vmatprep.subr.bf16.mxu0 0
        %1045 = vmatpush1.bf16.msra.mxu0 %v293
        %1046 = vmatprep.subr.bf16.mxu0 0
        %1047 = vmatpush1.bf16.msra.mxu0 %v294
        %1048 = vmatprep.subr.bf16.mxu0 0
        %1049 = vmatpush1.bf16.msra.mxu0 %v295
        %1050 = vmatprep.subr.bf16.mxu0 0
        %1051 = vmatpush1.bf16.msra.mxu0 %v296
        %1052 = vmatprep.subr.bf16.mxu0 0
        %1053 = vmatpush1.bf16.msra.mxu0 %v297
        %1054 = vmatprep.subr.bf16.mxu0 0
        %1055 = vmatpush1.bf16.msra.mxu0 %v298
        %1056 = vmatprep.subr.bf16.mxu0 0
        %1057 = vmatpush1.bf16.msra.mxu0 %v299
        %1058 = vmatprep.subr.bf16.mxu0 0
        %1059 = vmatpush1.bf16.msra.mxu0 0
        %1060 = vmatprep.subr.bf16.mxu0 0
        %1061 = vmatpush1.bf16.msra.mxu0 0
        %1062 = vmatprep.subr.bf16.mxu0 0
        %1063 = vmatpush1.bf16.msra.mxu0 0
        %1064 = vmatprep.subr.bf16.mxu0 0
        %1065 = vmatpush1.bf16.msra.mxu0 0
        %1066 = vmatprep.subr.bf16.mxu0 0
        %1067 = vmatpush1.bf16.msra.mxu0 0
        %1068 = vmatprep.subr.bf16.mxu0 0
        %1069 = vmatpush1.bf16.msra.mxu0 0
        %1070 = vmatprep.subr.bf16.mxu0 0
        %1071 = vmatpush1.bf16.msra.mxu0 0
        %1072 = vmatprep.subr.bf16.mxu0 0
        %1073 = vmatpush1.bf16.msra.mxu0 0
        %1074 = vmatprep.mubr.bf16.mxu0 0
        %1075 = vmatmul.mubr.bf16.gmra.mrb[0].mxu0 %v1041
        %v1076 = vpop.f32.mrb[0].mxu0
        %v1077 = vadd.f32 %v253, %v1076
        %v1078 = vpop.f32.mrb[0].mxu0
        %v1079 = vpop.f32.mrb[0].mxu0
        %v1080 = vpop.f32.mrb[0].mxu0
        %1081 = vdwg.mxu0
        %v1082 = vmax.f32 %v1077, 0.0
        %v1083 = vld [vmem:[%s764] sm:$0xff]
        %v1084 = vadd.f32 %v1082, %v1083
        %v1085 = vpack.c.bf16 %v1038, %v1038
        %1086 = vmatprep.subr.bf16.mxu0 0
        %1087 = vmatpush1.bf16.msra.mxu0 %v292
        %1088 = vmatprep.subr.bf16.mxu0 0
        %1089 = vmatpush1.bf16.msra.mxu0 %v293
        %1090 = vmatprep.subr.bf16.mxu0 0
        %1091 = vmatpush1.bf16.msra.mxu0 %v294
        %1092 = vmatprep.subr.bf16.mxu0 0
        %1093 = vmatpush1.bf16.msra.mxu0 %v295
        %1094 = vmatprep.subr.bf16.mxu0 0
        %1095 = vmatpush1.bf16.msra.mxu0 %v296
        %1096 = vmatprep.subr.bf16.mxu0 0
        %1097 = vmatpush1.bf16.msra.mxu0 %v297
        %1098 = vmatprep.subr.bf16.mxu0 0
        %1099 = vmatpush1.bf16.msra.mxu0 %v298
        %1100 = vmatprep.subr.bf16.mxu0 0
        %1101 = vmatpush1.bf16.msra.mxu0 %v299
        %1102 = vmatprep.subr.bf16.mxu0 0
        %1103 = vmatpush1.bf16.msra.mxu0 0
        %1104 = vmatprep.subr.bf16.mxu0 0
        %1105 = vmatpush1.bf16.msra.mxu0 0
        %1106 = vmatprep.subr.bf16.mxu0 0
        %1107 = vmatpush1.bf16.msra.mxu0 0
        %1108 = vmatprep.subr.bf16.mxu0 0
        %1109 = vmatpush1.bf16.msra.mxu0 0
        %1110 = vmatprep.subr.bf16.mxu0 0
        %1111 = vmatpush1.bf16.msra.mxu0 0
        %1112 = vmatprep.subr.bf16.mxu0 0
        %1113 = vmatpush1.bf16.msra.mxu0 0
        %1114 = vmatprep.subr.bf16.mxu0 0
        %1115 = vmatpush1.bf16.msra.mxu0 0
        %1116 = vmatprep.subr.bf16.mxu0 0
        %1117 = vmatpush1.bf16.msra.mxu0 0
        %1118 = vmatprep.mubr.bf16.mxu0 0
        %1119 = vmatmul.mubr.bf16.gmra.mrb[0].mxu0 %v1085
        %v1120 = vpop.f32.mrb[0].mxu0
        %v1121 = vadd.f32 %v253, %v1120
        %v1122 = vpop.f32.mrb[0].mxu0
        %v1123 = vpop.f32.mrb[0].mxu0
        %v1124 = vpop.f32.mrb[0].mxu0
        %1125 = vdwg.mxu0
        %v1126 = vmax.f32 %v1121, 0.0
        %v1127 = vld [vmem:[%s764 + $0x8] sm:$0xff]
        %v1128 = vadd.f32 %v1126, %v1127
        %1129 = vst [vmem:[%s764] sm:$0xff] %v1084
        %1130 = vst [vmem:[%s764 + $0x8] sm:$0xff] %v1128
        %v1131 = vpack.c.bf16 %v1084, %v1084
        %1132 = vmatprep.subr.bf16.mxu0 0
        %1133 = vmatpush1.bf16.msra.mxu0 %v292
        %1134 = vmatprep.subr.bf16.mxu0 0
        %1135 = vmatpush1.bf16.msra.mxu0 %v293
        %1136 = vmatprep.subr.bf16.mxu0 0
        %1137 = vmatpush1.bf16.msra.mxu0 %v294
        %1138 = vmatprep.subr.bf16.mxu0 0
        %1139 = vmatpush1.bf16.msra.mxu0 %v295
        %1140 = vmatprep.subr.bf16.mxu0 0
        %1141 = vmatpush1.bf16.msra.mxu0 %v296
        %1142 = vmatprep.subr.bf16.mxu0 0
        %1143 = vmatpush1.bf16.msra.mxu0 %v297
        %1144 = vmatprep.subr.bf16.mxu0 0
        %1145 = vmatpush1.bf16.msra.mxu0 %v298
        %1146 = vmatprep.subr.bf16.mxu0 0
        %1147 = vmatpush1.bf16.msra.mxu0 %v299
        %1148 = vmatprep.subr.bf16.mxu0 0
        %1149 = vmatpush1.bf16.msra.mxu0 0
        %1150 = vmatprep.subr.bf16.mxu0 0
        %1151 = vmatpush1.bf16.msra.mxu0 0
        %1152 = vmatprep.subr.bf16.mxu0 0
        %1153 = vmatpush1.bf16.msra.mxu0 0
        %1154 = vmatprep.subr.bf16.mxu0 0
        %1155 = vmatpush1.bf16.msra.mxu0 0
        %1156 = vmatprep.subr.bf16.mxu0 0
        %1157 = vmatpush1.bf16.msra.mxu0 0
        %1158 = vmatprep.subr.bf16.mxu0 0
        %1159 = vmatpush1.bf16.msra.mxu0 0
        %1160 = vmatprep.subr.bf16.mxu0 0
        %1161 = vmatpush1.bf16.msra.mxu0 0
        %1162 = vmatprep.subr.bf16.mxu0 0
        %1163 = vmatpush1.bf16.msra.mxu0 0
        %1164 = vmatprep.mubr.bf16.mxu0 0
        %1165 = vmatmul.mubr.bf16.gmra.mrb[0].mxu0 %v1131
        %v1166 = vpop.f32.mrb[0].mxu0
        %v1167 = vadd.f32 %v253, %v1166
        %v1168 = vpop.f32.mrb[0].mxu0
        %v1169 = vpop.f32.mrb[0].mxu0
        %v1170 = vpop.f32.mrb[0].mxu0
        %1171 = vdwg.mxu0
        %v1172 = vmax.f32 %v1167, 0.0
        %v1173 = vld [vmem:[%s672] sm:$0xff]
        %v1174 = vadd.f32 %v1172, %v1173
        %v1175 = vpack.c.bf16 %v1128, %v1128
        %1176 = vmatprep.subr.bf16.mxu0 0
        %1177 = vmatpush1.bf16.msra.mxu0 %v292
        %1178 = vmatprep.subr.bf16.mxu0 0
        %1179 = vmatpush1.bf16.msra.mxu0 %v293
        %1180 = vmatprep.subr.bf16.mxu0 0
        %1181 = vmatpush1.bf16.msra.mxu0 %v294
        %1182 = vmatprep.subr.bf16.mxu0 0
        %1183 = vmatpush1.bf16.msra.mxu0 %v295
        %1184 = vmatprep.subr.bf16.mxu0 0
        %1185 = vmatpush1.bf16.msra.mxu0 %v296
        %1186 = vmatprep.subr.bf16.mxu0 0
        %1187 = vmatpush1.bf16.msra.mxu0 %v297
        %1188 = vmatprep.subr.bf16.mxu0 0
        %1189 = vmatpush1.bf16.msra.mxu0 %v298
        %1190 = vmatprep.subr.bf16.mxu0 0
        %1191 = vmatpush1.bf16.msra.mxu0 %v299
        %1192 = vmatprep.subr.bf16.mxu0 0
        %1193 = vmatpush1.bf16.msra.mxu0 0
        %1194 = vmatprep.subr.bf16.mxu0 0
        %1195 = vmatpush1.bf16.msra.mxu0 0
        %1196 = vmatprep.subr.bf16.mxu0 0
        %1197 = vmatpush1.bf16.msra.mxu0 0
        %1198 = vmatprep.subr.bf16.mxu0 0
        %1199 = vmatpush1.bf16.msra.mxu0 0
        %1200 = vmatprep.subr.bf16.mxu0 0
        %1201 = vmatpush1.bf16.msra.mxu0 0
        %1202 = vmatprep.subr.bf16.mxu0 0
        %1203 = vmatpush1.bf16.msra.mxu0 0
        %1204 = vmatprep.subr.bf16.mxu0 0
        %1205 = vmatpush1.bf16.msra.mxu0 0
        %1206 = vmatprep.subr.bf16.mxu0 0
        %1207 = vmatpush1.bf16.msra.mxu0 0
        %1208 = vmatprep.mubr.bf16.mxu0 0
        %1209 = vmatmul.mubr.bf16.gmra.mrb[0].mxu0 %v1175
        %v1210 = vpop.f32.mrb[0].mxu0
        %v1211 = vadd.f32 %v253, %v1210
        %v1212 = vpop.f32.mrb[0].mxu0
        %v1213 = vpop.f32.mrb[0].mxu0
        %v1214 = vpop.f32.mrb[0].mxu0
        %1215 = vdwg.mxu0
        %v1216 = vmax.f32 %v1211, 0.0
        %v1217 = vld [vmem:[%s672 + $0x8] sm:$0xff]
        %v1218 = vadd.f32 %v1216, %v1217
        %1219 = vst [vmem:[%s672] sm:$0xff] %v1174
        %1220 = vst [vmem:[%s672 + $0x8] sm:$0xff] %v1218
        %v1221 = vpack.c.bf16 %v1174, %v1174
        %1222 = vmatprep.subr.bf16.mxu0 0
        %1223 = vmatpush1.bf16.msra.mxu0 %v292
        %1224 = vmatprep.subr.bf16.mxu0 0
        %1225 = vmatpush1.bf16.msra.mxu0 %v293
        %1226 = vmatprep.subr.bf16.mxu0 0
        %1227 = vmatpush1.bf16.msra.mxu0 %v294
        %1228 = vmatprep.subr.bf16.mxu0 0
        %1229 = vmatpush1.bf16.msra.mxu0 %v295
        %1230 = vmatprep.subr.bf16.mxu0 0
        %1231 = vmatpush1.bf16.msra.mxu0 %v296
        %1232 = vmatprep.subr.bf16.mxu0 0
        %1233 = vmatpush1.bf16.msra.mxu0 %v297
        %1234 = vmatprep.subr.bf16.mxu0 0
        %1235 = vmatpush1.bf16.msra.mxu0 %v298
        %1236 = vmatprep.subr.bf16.mxu0 0
        %1237 = vmatpush1.bf16.msra.mxu0 %v299
        %1238 = vmatprep.subr.bf16.mxu0 0
        %1239 = vmatpush1.bf16.msra.mxu0 0
        %1240 = vmatprep.subr.bf16.mxu0 0
        %1241 = vmatpush1.bf16.msra.mxu0 0
        %1242 = vmatprep.subr.bf16.mxu0 0
        %1243 = vmatpush1.bf16.msra.mxu0 0
        %1244 = vmatprep.subr.bf16.mxu0 0
        %1245 = vmatpush1.bf16.msra.mxu0 0
        %1246 = vmatprep.subr.bf16.mxu0 0
        %1247 = vmatpush1.bf16.msra.mxu0 0
        %1248 = vmatprep.subr.bf16.mxu0 0
        %1249 = vmatpush1.bf16.msra.mxu0 0
        %1250 = vmatprep.subr.bf16.mxu0 0
        %1251 = vmatpush1.bf16.msra.mxu0 0
        %1252 = vmatprep.subr.bf16.mxu0 0
        %1253 = vmatpush1.bf16.msra.mxu0 0
        %1254 = vmatprep.mubr.bf16.mxu0 0
        %1255 = vmatmul.mubr.bf16.gmra.mrb[0].mxu0 %v1221
        %v1256 = vpop.f32.mrb[0].mxu0
        %v1257 = vadd.f32 %v253, %v1256
        %v1258 = vpop.f32.mrb[0].mxu0
        %v1259 = vpop.f32.mrb[0].mxu0
        %v1260 = vpop.f32.mrb[0].mxu0
        %1261 = vdwg.mxu0
        %v1262 = vmax.f32 %v1257, 0.0
        %v1263 = vld [vmem:[%s580] sm:$0xff]
        %v1264 = vadd.f32 %v1262, %v1263
        %v1265 = vpack.c.bf16 %v1218, %v1218
        %1266 = vmatprep.subr.bf16.mxu0 0
        %1267 = vmatpush1.bf16.msra.mxu0 %v292
        %1268 = vmatprep.subr.bf16.mxu0 0
        %1269 = vmatpush1.bf16.msra.mxu0 %v293
        %1270 = vmatprep.subr.bf16.mxu0 0
        %1271 = vmatpush1.bf16.msra.mxu0 %v294
        %1272 = vmatprep.subr.bf16.mxu0 0
        %1273 = vmatpush1.bf16.msra.mxu0 %v295
        %1274 = vmatprep.subr.bf16.mxu0 0
        %1275 = vmatpush1.bf16.msra.mxu0 %v296
        %1276 = vmatprep.subr.bf16.mxu0 0
        %1277 = vmatpush1.bf16.msra.mxu0 %v297
        %1278 = vmatprep.subr.bf16.mxu0 0
        %1279 = vmatpush1.bf16.msra.mxu0 %v298
        %1280 = vmatprep.subr.bf16.mxu0 0
        %1281 = vmatpush1.bf16.msra.mxu0 %v299
        %1282 = vmatprep.subr.bf16.mxu0 0
        %1283 = vmatpush1.bf16.msra.mxu0 0
        %1284 = vmatprep.subr.bf16.mxu0 0
        %1285 = vmatpush1.bf16.msra.mxu0 0
        %1286 = vmatprep.subr.bf16.mxu0 0
        %1287 = vmatpush1.bf16.msra.mxu0 0
        %1288 = vmatprep.subr.bf16.mxu0 0
        %1289 = vmatpush1.bf16.msra.mxu0 0
        %1290 = vmatprep.subr.bf16.mxu0 0
        %1291 = vmatpush1.bf16.msra.mxu0 0
        %1292 = vmatprep.subr.bf16.mxu0 0
        %1293 = vmatpush1.bf16.msra.mxu0 0
        %1294 = vmatprep.subr.bf16.mxu0 0
        %1295 = vmatpush1.bf16.msra.mxu0 0
        %1296 = vmatprep.subr.bf16.mxu0 0
        %1297 = vmatpush1.bf16.msra.mxu0 0
        %1298 = vmatprep.mubr.bf16.mxu0 0
        %1299 = vmatmul.mubr.bf16.gmra.mrb[0].mxu0 %v1265
        %v1300 = vpop.f32.mrb[0].mxu0
        %v1301 = vadd.f32 %v253, %v1300
        %v1302 = vpop.f32.mrb[0].mxu0
        %v1303 = vpop.f32.mrb[0].mxu0
        %v1304 = vpop.f32.mrb[0].mxu0
        %1305 = vdwg.mxu0
        %v1306 = vmax.f32 %v1301, 0.0
        %v1307 = vld [vmem:[%s580 + $0x8] sm:$0xff]
        %v1308 = vadd.f32 %v1306, %v1307
        %1309 = vst [vmem:[%s580] sm:$0xff] %v1264
        %1310 = vst [vmem:[%s580 + $0x8] sm:$0xff] %v1308
        %v1311 = vpack.c.bf16 %v1264, %v1264
        %1312 = vmatprep.subr.bf16.mxu0 0
        %1313 = vmatpush1.bf16.msra.mxu0 %v292
        %1314 = vmatprep.subr.bf16.mxu0 0
        %1315 = vmatpush1.bf16.msra.mxu0 %v293
        %1316 = vmatprep.subr.bf16.mxu0 0
        %1317 = vmatpush1.bf16.msra.mxu0 %v294
        %1318 = vmatprep.subr.bf16.mxu0 0
        %1319 = vmatpush1.bf16.msra.mxu0 %v295
        %1320 = vmatprep.subr.bf16.mxu0 0
        %1321 = vmatpush1.bf16.msra.mxu0 %v296
        %1322 = vmatprep.subr.bf16.mxu0 0
        %1323 = vmatpush1.bf16.msra.mxu0 %v297
        %1324 = vmatprep.subr.bf16.mxu0 0
        %1325 = vmatpush1.bf16.msra.mxu0 %v298
        %1326 = vmatprep.subr.bf16.mxu0 0
        %1327 = vmatpush1.bf16.msra.mxu0 %v299
        %1328 = vmatprep.subr.bf16.mxu0 0
        %1329 = vmatpush1.bf16.msra.mxu0 0
        %1330 = vmatprep.subr.bf16.mxu0 0
        %1331 = vmatpush1.bf16.msra.mxu0 0
        %1332 = vmatprep.subr.bf16.mxu0 0
        %1333 = vmatpush1.bf16.msra.mxu0 0
        %1334 = vmatprep.subr.bf16.mxu0 0
        %1335 = vmatpush1.bf16.msra.mxu0 0
        %1336 = vmatprep.subr.bf16.mxu0 0
        %1337 = vmatpush1.bf16.msra.mxu0 0
        %1338 = vmatprep.subr.bf16.mxu0 0
        %1339 = vmatpush1.bf16.msra.mxu0 0
        %1340 = vmatprep.subr.bf16.mxu0 0
        %1341 = vmatpush1.bf16.msra.mxu0 0
        %1342 = vmatprep.subr.bf16.mxu0 0
        %1343 = vmatpush1.bf16.msra.mxu0 0
        %1344 = vmatprep.mubr.bf16.mxu0 0
        %1345 = vmatmul.mubr.bf16.gmra.mrb[0].mxu0 %v1311
        %v1346 = vpop.f32.mrb[0].mxu0
        %v1347 = vadd.f32 %v253, %v1346
        %v1348 = vpop.f32.mrb[0].mxu0
        %v1349 = vpop.f32.mrb[0].mxu0
        %v1350 = vpop.f32.mrb[0].mxu0
        %1351 = vdwg.mxu0
        %v1352 = vmax.f32 %v1347, 0.0
        %v1353 = vld [vmem:[%s488] sm:$0xff]
        %v1354 = vadd.f32 %v1352, %v1353
        %v1355 = vpack.c.bf16 %v1308, %v1308
        %1356 = vmatprep.subr.bf16.mxu0 0
        %1357 = vmatpush1.bf16.msra.mxu0 %v292
        %1358 = vmatprep.subr.bf16.mxu0 0
        %1359 = vmatpush1.bf16.msra.mxu0 %v293
        %1360 = vmatprep.subr.bf16.mxu0 0
        %1361 = vmatpush1.bf16.msra.mxu0 %v294
        %1362 = vmatprep.subr.bf16.mxu0 0
        %1363 = vmatpush1.bf16.msra.mxu0 %v295
        %1364 = vmatprep.subr.bf16.mxu0 0
        %1365 = vmatpush1.bf16.msra.mxu0 %v296
        %1366 = vmatprep.subr.bf16.mxu0 0
        %1367 = vmatpush1.bf16.msra.mxu0 %v297
        %1368 = vmatprep.subr.bf16.mxu0 0
        %1369 = vmatpush1.bf16.msra.mxu0 %v298
        %1370 = vmatprep.subr.bf16.mxu0 0
        %1371 = vmatpush1.bf16.msra.mxu0 %v299
        %1372 = vmatprep.subr.bf16.mxu0 0
        %1373 = vmatpush1.bf16.msra.mxu0 0
        %1374 = vmatprep.subr.bf16.mxu0 0
        %1375 = vmatpush1.bf16.msra.mxu0 0
        %1376 = vmatprep.subr.bf16.mxu0 0
        %1377 = vmatpush1.bf16.msra.mxu0 0
        %1378 = vmatprep.subr.bf16.mxu0 0
        %1379 = vmatpush1.bf16.msra.mxu0 0
        %1380 = vmatprep.subr.bf16.mxu0 0
        %1381 = vmatpush1.bf16.msra.mxu0 0
        %1382 = vmatprep.subr.bf16.mxu0 0
        %1383 = vmatpush1.bf16.msra.mxu0 0
        %1384 = vmatprep.subr.bf16.mxu0 0
        %1385 = vmatpush1.bf16.msra.mxu0 0
        %1386 = vmatprep.subr.bf16.mxu0 0
        %1387 = vmatpush1.bf16.msra.mxu0 0
        %1388 = vmatprep.mubr.bf16.mxu0 0
        %1389 = vmatmul.mubr.bf16.gmra.mrb[0].mxu0 %v1355
        %v1390 = vpop.f32.mrb[0].mxu0
        %v1391 = vadd.f32 %v253, %v1390
        %v1392 = vpop.f32.mrb[0].mxu0
        %v1393 = vpop.f32.mrb[0].mxu0
        %v1394 = vpop.f32.mrb[0].mxu0
        %1395 = vdwg.mxu0
        %v1396 = vmax.f32 %v1391, 0.0
        %v1397 = vld [vmem:[%s488 + $0x8] sm:$0xff]
        %v1398 = vadd.f32 %v1396, %v1397
        %1399 = vst [vmem:[%s488] sm:$0xff] %v1354
        %1400 = vst [vmem:[%s488 + $0x8] sm:$0xff] %v1398
        %v1401 = vpack.c.bf16 %v1354, %v1354
        %1402 = vmatprep.subr.bf16.mxu0 0
        %1403 = vmatpush1.bf16.msra.mxu0 %v292
        %1404 = vmatprep.subr.bf16.mxu0 0
        %1405 = vmatpush1.bf16.msra.mxu0 %v293
        %1406 = vmatprep.subr.bf16.mxu0 0
        %1407 = vmatpush1.bf16.msra.mxu0 %v294
        %1408 = vmatprep.subr.bf16.mxu0 0
        %1409 = vmatpush1.bf16.msra.mxu0 %v295
        %1410 = vmatprep.subr.bf16.mxu0 0
        %1411 = vmatpush1.bf16.msra.mxu0 %v296
        %1412 = vmatprep.subr.bf16.mxu0 0
        %1413 = vmatpush1.bf16.msra.mxu0 %v297
        %1414 = vmatprep.subr.bf16.mxu0 0
        %1415 = vmatpush1.bf16.msra.mxu0 %v298
        %1416 = vmatprep.subr.bf16.mxu0 0
        %1417 = vmatpush1.bf16.msra.mxu0 %v299
        %1418 = vmatprep.subr.bf16.mxu0 0
        %1419 = vmatpush1.bf16.msra.mxu0 0
        %1420 = vmatprep.subr.bf16.mxu0 0
        %1421 = vmatpush1.bf16.msra.mxu0 0
        %1422 = vmatprep.subr.bf16.mxu0 0
        %1423 = vmatpush1.bf16.msra.mxu0 0
        %1424 = vmatprep.subr.bf16.mxu0 0
        %1425 = vmatpush1.bf16.msra.mxu0 0
        %1426 = vmatprep.subr.bf16.mxu0 0
        %1427 = vmatpush1.bf16.msra.mxu0 0
        %1428 = vmatprep.subr.bf16.mxu0 0
        %1429 = vmatpush1.bf16.msra.mxu0 0
        %1430 = vmatprep.subr.bf16.mxu0 0
        %1431 = vmatpush1.bf16.msra.mxu0 0
        %1432 = vmatprep.subr.bf16.mxu0 0
        %1433 = vmatpush1.bf16.msra.mxu0 0
        %1434 = vmatprep.mubr.bf16.mxu0 0
        %1435 = vmatmul.mubr.bf16.gmra.mrb[0].mxu0 %v1401
        %v1436 = vpop.f32.mrb[0].mxu0
        %v1437 = vadd.f32 %v253, %v1436
        %v1438 = vpop.f32.mrb[0].mxu0
        %v1439 = vpop.f32.mrb[0].mxu0
        %v1440 = vpop.f32.mrb[0].mxu0
        %1441 = vdwg.mxu0
        %v1442 = vmax.f32 %v1437, 0.0
        %v1443 = vld [vmem:[%s396] sm:$0xff]
        %v1444 = vadd.f32 %v1442, %v1443
        %v1445 = vpack.c.bf16 %v1398, %v1398
        %1446 = vmatprep.subr.bf16.mxu0 0
        %1447 = vmatpush1.bf16.msra.mxu0 %v292
        %1448 = vmatprep.subr.bf16.mxu0 0
        %1449 = vmatpush1.bf16.msra.mxu0 %v293
        %1450 = vmatprep.subr.bf16.mxu0 0
        %1451 = vmatpush1.bf16.msra.mxu0 %v294
        %1452 = vmatprep.subr.bf16.mxu0 0
        %1453 = vmatpush1.bf16.msra.mxu0 %v295
        %1454 = vmatprep.subr.bf16.mxu0 0
        %1455 = vmatpush1.bf16.msra.mxu0 %v296
        %1456 = vmatprep.subr.bf16.mxu0 0
        %1457 = vmatpush1.bf16.msra.mxu0 %v297
        %1458 = vmatprep.subr.bf16.mxu0 0
        %1459 = vmatpush1.bf16.msra.mxu0 %v298
        %1460 = vmatprep.subr.bf16.mxu0 0
        %1461 = vmatpush1.bf16.msra.mxu0 %v299
        %1462 = vmatprep.subr.bf16.mxu0 0
        %1463 = vmatpush1.bf16.msra.mxu0 0
        %1464 = vmatprep.subr.bf16.mxu0 0
        %1465 = vmatpush1.bf16.msra.mxu0 0
        %1466 = vmatprep.subr.bf16.mxu0 0
        %1467 = vmatpush1.bf16.msra.mxu0 0
        %1468 = vmatprep.subr.bf16.mxu0 0
        %1469 = vmatpush1.bf16.msra.mxu0 0
        %1470 = vmatprep.subr.bf16.mxu0 0
        %1471 = vmatpush1.bf16.msra.mxu0 0
        %1472 = vmatprep.subr.bf16.mxu0 0
        %1473 = vmatpush1.bf16.msra.mxu0 0
        %1474 = vmatprep.subr.bf16.mxu0 0
        %1475 = vmatpush1.bf16.msra.mxu0 0
        %1476 = vmatprep.subr.bf16.mxu0 0
        %1477 = vmatpush1.bf16.msra.mxu0 0
        %1478 = vmatprep.mubr.bf16.mxu0 0
        %1479 = vmatmul.mubr.bf16.gmra.mrb[0].mxu0 %v1445
        %v1480 = vpop.f32.mrb[0].mxu0
        %v1481 = vadd.f32 %v253, %v1480
        %v1482 = vpop.f32.mrb[0].mxu0
        %v1483 = vpop.f32.mrb[0].mxu0
        %v1484 = vpop.f32.mrb[0].mxu0
        %1485 = vdwg.mxu0
        %v1486 = vmax.f32 %v1481, 0.0
        %v1487 = vld [vmem:[%s396 + $0x8] sm:$0xff]
        %v1488 = vadd.f32 %v1486, %v1487
        %1489 = vst [vmem:[%s396] sm:$0xff] %v1444
        %1490 = vst [vmem:[%s396 + $0x8] sm:$0xff] %v1488
        %v1491 = vpack.c.bf16 %v1444, %v1444
        %1492 = vmatprep.subr.bf16.mxu0 0
        %1493 = vmatpush1.bf16.msra.mxu0 %v292
        %1494 = vmatprep.subr.bf16.mxu0 0
        %1495 = vmatpush1.bf16.msra.mxu0 %v293
        %1496 = vmatprep.subr.bf16.mxu0 0
        %1497 = vmatpush1.bf16.msra.mxu0 %v294
        %1498 = vmatprep.subr.bf16.mxu0 0
        %1499 = vmatpush1.bf16.msra.mxu0 %v295
        %1500 = vmatprep.subr.bf16.mxu0 0
        %1501 = vmatpush1.bf16.msra.mxu0 %v296
        %1502 = vmatprep.subr.bf16.mxu0 0
        %1503 = vmatpush1.bf16.msra.mxu0 %v297
        %1504 = vmatprep.subr.bf16.mxu0 0
        %1505 = vmatpush1.bf16.msra.mxu0 %v298
        %1506 = vmatprep.subr.bf16.mxu0 0
        %1507 = vmatpush1.bf16.msra.mxu0 %v299
        %1508 = vmatprep.subr.bf16.mxu0 0
        %1509 = vmatpush1.bf16.msra.mxu0 0
        %1510 = vmatprep.subr.bf16.mxu0 0
        %1511 = vmatpush1.bf16.msra.mxu0 0
        %1512 = vmatprep.subr.bf16.mxu0 0
        %1513 = vmatpush1.bf16.msra.mxu0 0
        %1514 = vmatprep.subr.bf16.mxu0 0
        %1515 = vmatpush1.bf16.msra.mxu0 0
        %1516 = vmatprep.subr.bf16.mxu0 0
        %1517 = vmatpush1.bf16.msra.mxu0 0
        %1518 = vmatprep.subr.bf16.mxu0 0
        %1519 = vmatpush1.bf16.msra.mxu0 0
        %1520 = vmatprep.subr.bf16.mxu0 0
        %1521 = vmatpush1.bf16.msra.mxu0 0
        %1522 = vmatprep.subr.bf16.mxu0 0
        %1523 = vmatpush1.bf16.msra.mxu0 0
        %1524 = vmatprep.mubr.bf16.mxu0 0
        %1525 = vmatmul.mubr.bf16.gmra.mrb[0].mxu0 %v1491
        %v1526 = vpop.f32.mrb[0].mxu0
        %v1527 = vadd.f32 %v253, %v1526
        %v1528 = vpop.f32.mrb[0].mxu0
        %v1529 = vpop.f32.mrb[0].mxu0
        %v1530 = vpop.f32.mrb[0].mxu0
        %1531 = vdwg.mxu0
        %v1532 = vmax.f32 %v1527, 0.0
        %v1533 = vld [vmem:[%s228] sm:$0xff]
        %v1534 = vadd.f32 %v1532, %v1533
        %v1535 = vpack.c.bf16 %v1488, %v1488
        %1536 = vmatprep.subr.bf16.mxu0 0
        %1537 = vmatpush1.bf16.msra.mxu0 %v292
        %1538 = vmatprep.subr.bf16.mxu0 0
        %1539 = vmatpush1.bf16.msra.mxu0 %v293
        %1540 = vmatprep.subr.bf16.mxu0 0
        %1541 = vmatpush1.bf16.msra.mxu0 %v294
        %1542 = vmatprep.subr.bf16.mxu0 0
        %1543 = vmatpush1.bf16.msra.mxu0 %v295
        %1544 = vmatprep.subr.bf16.mxu0 0
        %1545 = vmatpush1.bf16.msra.mxu0 %v296
        %1546 = vmatprep.subr.bf16.mxu0 0
        %1547 = vmatpush1.bf16.msra.mxu0 %v297
        %1548 = vmatprep.subr.bf16.mxu0 0
        %1549 = vmatpush1.bf16.msra.mxu0 %v298
        %1550 = vmatprep.subr.bf16.mxu0 0
        %1551 = vmatpush1.bf16.msra.mxu0 %v299
        %1552 = vmatprep.subr.bf16.mxu0 0
        %1553 = vmatpush1.bf16.msra.mxu0 0
        %1554 = vmatprep.subr.bf16.mxu0 0
        %1555 = vmatpush1.bf16.msra.mxu0 0
        %1556 = vmatprep.subr.bf16.mxu0 0
        %1557 = vmatpush1.bf16.msra.mxu0 0
        %1558 = vmatprep.subr.bf16.mxu0 0
        %1559 = vmatpush1.bf16.msra.mxu0 0
        %1560 = vmatprep.subr.bf16.mxu0 0
        %1561 = vmatpush1.bf16.msra.mxu0 0
        %1562 = vmatprep.subr.bf16.mxu0 0
        %1563 = vmatpush1.bf16.msra.mxu0 0
        %1564 = vmatprep.subr.bf16.mxu0 0
        %1565 = vmatpush1.bf16.msra.mxu0 0
        %1566 = vmatprep.subr.bf16.mxu0 0
        %1567 = vmatpush1.bf16.msra.mxu0 0
        %1568 = vmatprep.mubr.bf16.mxu0 0
        %1569 = vmatmul.mubr.bf16.gmra.mrb[0].mxu0 %v1535
        %v1570 = vpop.f32.mrb[0].mxu0
        %v1571 = vadd.f32 %v253, %v1570
        %v1572 = vpop.f32.mrb[0].mxu0
        %v1573 = vpop.f32.mrb[0].mxu0
        %v1574 = vpop.f32.mrb[0].mxu0
        %1575 = vdwg.mxu0
        %v1576 = vmax.f32 %v1571, 0.0
        %v1577 = vld [vmem:[%s228 + $0x8] sm:$0xff]
        %v1578 = vadd.f32 %v1576, %v1577
        %1579 = vst [vmem:[%s228] sm:$0xff] %v1534
        %1580 = vst [vmem:[%s228 + $0x8] sm:$0xff] %v1578
        %s1581 = sand.u32 %s97, 1
        %s1582 = scalar_lea.sflag [#allocation4], %s1581
        %s1583 = sand.u32 %s97, 1
        %s1584 = smul.addr %s1583, 128
        %s1585 = scalar_lea.vmem [#allocation7], %s1584
        // Predicated region
        $region41: #{tpu_custom_call.1} parent=31 // pred_check
          %p1586 = pneg %p107
        $region42: #{tpu_custom_call.1} parent=31 // pred_check_branch
          %1588 = sbr.rel (%p1586) target = $region44
        $region43: #{tpu_custom_call.1} parent=31 // pred_region
          #allocation11 [shape = 'u32[6]{0}', space=smem, size = 0x18, scoped, tag = 'DMA stride descriptor']
          %s1589 = smul.u32 2, %s21
          %s1591 = ssub.s32 2048, 2048
          %1592 = vsyncadd %s1582, %s1591
          %s1593 = smul.addr %s1589, 128
          %s1594 = scalar_lea.hbm %s3, %s1593
          %s1596 = sshll.u32 1, 14
          %s1597 = sxor.u32 4294967295, %s1596
          %s1600 = sshll.u32 7, 18
          %s1601 = sxor.u32 4294967295, %s1600
          %s1602 = sand.u32 0, %s1601
          %s1604 = sor.u32 %s1602, 0
          %s1606 = sshll.u32 3, 24
          %s1607 = sxor.u32 4294967295, %s1606
          %s1608 = sand.u32 %s1604, %s1607
          %s1610 = sor.u32 %s1608, 0
          %s1611 = sshll.u32 %s1585, 4
          %s1612 = int_to_ptr.vmem [resolvable:$true] %s1611
          %1618 = sst [smem:[#allocation11]] 256
          %s1619 = scalar_lea.smem [#allocation11], 1
          %1620 = sst [smem:[%s1619]] 512
          %s1621 = scalar_lea.smem [#allocation11], 2
          %1622 = sst [smem:[%s1621]] 2
          %s1623 = scalar_lea.smem [#allocation11], 3
          %1624 = sst [smem:[%s1623]] 128
          %s1625 = scalar_lea.smem [#allocation11], 4
          %1626 = sst [smem:[%s1625]] 128
          %s1627 = scalar_lea.smem [#allocation11], 5
          %1628 = sst [smem:[%s1627]] 8
          %1630 = dma.general %s1612, 2048, %s1594, %s1582, [#allocation10], [#allocation11], %s1610, 0
        $region44: #{tpu_custom_call.1} parent=31 // pred_fallthru
          _
      $region32: #{tpu_custom_call.1} parent=5 // pred_fallthru
        _
      %p1631 = scmp.le.s32.totalorder 2, %s16
      // Predicated region
      $region45: #{tpu_custom_call.1} parent=5 // pred_check
        %p1632 = pneg %p1631
      $region46: #{tpu_custom_call.1} parent=5 // pred_check_branch
        %1634 = sbr.rel (%p1632) target = $region48
      $region47: #{tpu_custom_call.1} parent=5 // pred_region
        %s1635 = ssub.s32 %s16, 2
        // Predicated region
        $region49: #{tpu_custom_call.1} parent=47 // pred_check
          %p1636 = pneg %p113
        $region50: #{tpu_custom_call.1} parent=47 // pred_check_branch
          %1638 = sbr.rel (%p1636) target = $region52
        $region51: #{tpu_custom_call.1} parent=47 // pred_region
          %s1639 = sand.u32 %s98, 1
          %s1640 = scalar_lea.sflag [#allocation4], %s1639
          %s1641 = sand.u32 %s98, 1
          %s1642 = smul.addr %s1641, 128
          %s1643 = scalar_lea.vmem [#allocation7], %s1642
          %1644 = dma.done %s1640, 2048
        $region52: #{tpu_custom_call.1} parent=47 // pred_fallthru
          _
      $region48: #{tpu_custom_call.1} parent=5 // pred_fallthru
        _
    $region6: #{tpu_custom_call.1} parent=1 // loop_footer
      %s20 = sadd.s32 1, %s16
    $region7: #{tpu_custom_call.1} parent=1 // loop_footer_branch
      %15 = sbr.rel target = $region3
    $region8: #{tpu_custom_call.1} parent=1 // loop_exit
      _
    %1645 = vsyncpa [#allocation3], 1
    %s1646 = scalar_lea.sflag [#allocation3], 1
    %1647 = vsyncpa %s1646, 1
    %1648 = vsyncpa [#allocation6], 1
    %1649 = vsyncpa [#allocation4], 1
    %s1650 = scalar_lea.sflag [#allocation4], 1
    %1651 = vsyncpa %s1650, 1

</llo_original>
